<compile_context>
chip_gen: v5e
topology: v5e:2x2
jax: 0.10.0
libtpu: 0.0.40
codegen_flags: <defaults>
</compile_context>

<pallas_src>
import jax
import jax.numpy as jnp
import numpy as np
from jax.experimental import pallas as pl
from jax.experimental.pallas import tpu as pltpu

HYPER_DIMS = [8, 32]       # [z_dim, hidden] of every hyper-network
MODEL_DIMS = [16, 32, 8]   # target (generated) DQN layer widths
Z_DIM = HYPER_DIMS[0]
H = HYPER_DIMS[1]
N_LAYERS = len(MODEL_DIMS) - 1
B = 8                      # batch

# In-kernel replication index math uses shift/mask, so every generated layer's
# input width must be a power of two (true for MODEL_DIMS = [16, 32, 8]).
assert all(d > 0 and (d & (d - 1)) == 0 for d in MODEL_DIMS[:-1])


def _ceil_to(a, m):
    return ((a + m - 1) // m) * m


# Padded widths.
XW = _ceil_to(max(MODEL_DIMS[:-1]) + 1, 8)   # 40: activation slab [x | 1 | 0-pad]
ZW = _ceil_to(Z_DIM + 1, 8)                  # 16: [z | 1 | 0-pad]
HW = _ceil_to(2 * H + 1, 8)                  # 72: fused hidden [h_w | h_b | 1 | 0]
# Per-layer output slab width: non-final layers emit the next x_aug (width XW,
# const-1 lane included); the final layer emits exactly MODEL_DIMS[-1] lanes.
OUT_W = [XW] * (N_LAYERS - 1) + [MODEL_DIMS[-1]]


def hyperdqn_kernel(x_ref, z_ref, *refs):
    out_ref = refs[-1]
    layer_refs = refs[:-1]              # 4 refs per target layer
    x = x_ref[...]                      # (B, XW)  [x | 1 | 0-pad]
    z = z_ref[...]                      # (B, ZW)  [z | 1 | 0-pad]
    for i in range(N_LAYERS):           # static unroll over the 2 target layers
        w1f_ref, w2m_ref, xq_ref, hq_ref = layer_refs[4 * i:4 * i + 4]
        d_in = MODEL_DIMS[i]
        r = H * d_in                    # outer-product feature width (per layer)
        shift = d_in.bit_length() - 1   # d_in is a power of two

        # Fused first hyper-layer of BOTH hypernets (first-layer biases folded
        # in via z's constant-1 column); h = [h_w | h_bias | 1 | 0-pad].
        h = jnp.maximum(
            jnp.dot(z, w1f_ref[...], preferred_element_type=jnp.float32), 0.0)   # (B, HW)

        # 0/1 replication matrices built IN-KERNEL (iota + shift/mask, a few
        # hundred VPU vreg-ops) instead of ~1 MiB of HBM DMA per call.  Keeping
        # the MXU-dot replication avoids any unaligned lane shuffles.
        col = jax.lax.broadcasted_iota(jnp.int32, (d_in, r), 1)
        row = jax.lax.broadcasted_iota(jnp.int32, (d_in, r), 0)
        ra = jnp.where((col & (d_in - 1)) == row, 1.0, 0.0)        # A[b,c] = x[b, c % d_in]
        a = jnp.dot(x[:, :d_in], ra, preferred_element_type=jnp.float32)          # (B, r)

        colh = jax.lax.broadcasted_iota(jnp.int32, (H, r), 1)
        rowh = jax.lax.broadcasted_iota(jnp.int32, (H, r), 0)
        sb = jnp.where((colh >> shift) == rowh, 1.0, 0.0)          # Bv[b,c] = h_w[b, c // d_in]
        bv = jnp.dot(h[:, :H], sb, preferred_element_type=jnp.float32)            # (B, r)

        # y = (h_w (x) x) @ W2r  +  x_aug @ [B2 ; bb2 | const]  +  h @ [0 ; BW2 ; 0]
        #   == einsum('bj,bjk->bk', x, wflat.view(d_in, d_out)) + bias   exactly.
        y = jnp.dot(a * bv, w2m_ref[...], preferred_element_type=jnp.float32)
        y = y + jnp.dot(x, xq_ref[...], preferred_element_type=jnp.float32)
        y = y + jnp.dot(h, hq_ref[...], preferred_element_type=jnp.float32)
        # ReLU on every generated layer (incl. the last) matches the PyTorch
        # loop; for non-final layers y already carries the const-1 lane of the
        # next x_aug (relu(1) == 1).
        x = jnp.maximum(y, 0.0)
    out_ref[...] = x[:, :MODEL_DIMS[-1]]


def _augment(a, width):
    b = a.shape[0]
    return jnp.concatenate(
        [a.astype(jnp.float32),
         jnp.ones((b, 1), jnp.float32),
         jnp.zeros((b, width - a.shape[1] - 1), jnp.float32)], axis=1)


def hyperdqn_forward(x, z, packed):
    # Single grid point: at B=8 a grid is pure overhead.  To scale the batch,
    # add grid=(num_row_tiles,) with index_map=lambda i: (0, 0) for every packed
    # weight buffer (weights DMA'd once and kept VMEM-resident) and
    # lambda i: (i, 0) for x_aug/z_aug/out, plus
    # compiler_params=pltpu.CompilerParams(dimension_semantics=("parallel",))
    # so v7x's two TensorCores split the rows; size the row tile against v7x's
    # 64 MiB VMEM rather than v5e/v6e's 128 MiB.
    x_aug = _augment(x, XW)
    z_aug = _augment(z, ZW)
    args = [x_aug, z_aug, *packed]
    return pl.pallas_call(
        hyperdqn_kernel,
        out_shape=jax.ShapeDtypeStruct((x.shape[0], MODEL_DIMS[-1]), jnp.float32),
        in_specs=[pl.BlockSpec(memory_space=pltpu.MemorySpace.VMEM)] * len(args),
        out_specs=pl.BlockSpec(memory_space=pltpu.MemorySpace.VMEM),
    )(*args)


def xavier_uniform(key, fan_in, fan_out):
    limit = (6.0 / (fan_in + fan_out)) ** 0.5
    return jax.random.uniform(key, (fan_in, fan_out), jnp.float32, -limit, limit)


def make_params(key):
    # Matches HyperDQN.__init__: per target layer, one hyper-net producing the
    # flattened weight matrix and one producing the bias vector; each hyper-net
    # is Linear(xavier_uniform weights, zero bias) layers over HYPER_DIMS + [out].
    params = []
    for i in range(len(MODEL_DIMS) - 1):
        param_size = MODEL_DIMS[i] * MODEL_DIMS[i + 1]
        for last in (param_size, MODEL_DIMS[i + 1]):   # weight-net, then bias-net
            dims = HYPER_DIMS + [last]
            for j in range(len(dims) - 1):
                key, sub = jax.random.split(key)
                params.append(xavier_uniform(sub, dims[j], dims[j + 1]))
                params.append(jnp.zeros((1, dims[j + 1]), jnp.float32))
    return params


def pack_params(params):
    """Repack the 16 PyTorch-layout hypernet params into 4 small f32 buffers/layer.

    Per target layer i with (d_in, d_out) and out_w = OUT_W[i]:
      w1f (ZW, HW):        fused first layers of weight- and bias-hypernets
                           ([w1 | bw1] columns), first-layer biases on z's
                           const-1 row, and a constant-1 column at index 2H.
      w2m (H*d_in, out_w): weight-hypernet second layer, row m*d_in + j pairs
                           with the in-kernel feature h_w[m] * x[j].
      xq  (XW, out_w):     terms linear in x_aug: rows j<d_in hold
                           b2.view(d_in, d_out); the const-1 row holds bb2 and,
                           for non-final layers, a 1 in column d_out that emits
                           the next layer's const-1 lane.
      hq  (HW, out_w):     terms linear in h: rows H..2H-1 hold bw2.
    Then relu(F @ w2m + x_aug @ xq + h @ hq) ==
         relu(einsum('bj,bjk->bk', x, wflat.view(d_in, d_out)) + bias)  exactly.
    """
    packed = []
    for i in range(N_LAYERS):
        d_in, d_out = MODEL_DIMS[i], MODEL_DIMS[i + 1]
        out_w = OUT_W[i]
        w1, b1, w2, b2, bw1, bb1, bw2, bb2 = (
            np.asarray(p, np.float32) for p in params[8 * i:8 * (i + 1)])
        b1, b2, bb1, bb2 = b1.reshape(-1), b2.reshape(-1), bb1.reshape(-1), bb2.reshape(-1)

        w1f = np.zeros((ZW, HW), np.float32)
        w1f[:Z_DIM, 0:H] = w1
        w1f[:Z_DIM, H:2 * H] = bw1
        w1f[Z_DIM, 0:H] = b1
        w1f[Z_DIM, H:2 * H] = bb1
        w1f[Z_DIM, 2 * H] = 1.0          # constant-1 lane of the fused hidden

        w2m = np.zeros((H * d_in, out_w), np.float32)
        w2m[:, :d_out] = w2.reshape(H * d_in, d_out)

        xq = np.zeros((XW, out_w), np.float32)
        xq[:d_in, :d_out] = b2.reshape(d_in, d_out)
        xq[d_in, :d_out] = bb2
        if i + 1 < N_LAYERS:
            xq[d_in, d_out] = 1.0        # emit the next layer's const-1 lane

        hq = np.zeros((HW, out_w), np.float32)
        hq[H:2 * H, :d_out] = bw2

        packed += [jnp.asarray(w1f), jnp.asarray(w2m), jnp.asarray(xq), jnp.asarray(hq)]
    return packed


def reference(x, z, params):
    # Pure-JAX reference mirroring the PyTorch forward (uses the raw params).
    for i in range(len(MODEL_DIMS) - 1):
        w1, b1, w2, b2, bw1, bb1, bw2, bb2 = params[8 * i:8 * (i + 1)]
        wflat = jnp.maximum(z @ w1 + b1, 0.0) @ w2 + b2
        bias = jnp.maximum(z @ bw1 + bb1, 0.0) @ bw2 + bb2
        W = wflat.reshape(-1, MODEL_DIMS[i], MODEL_DIMS[i + 1])
        x = jnp.maximum(jnp.einsum('bj,bjk->bk', x, W) + bias, 0.0)
    return x


if __name__ == "__main__":
    key = jax.random.PRNGKey(0)
    kx, kz, kp = jax.random.split(key, 3)
    x = jax.random.normal(kx, (B, MODEL_DIMS[0]), jnp.float32)
    z = jax.random.normal(kz, (B, Z_DIM), jnp.float32)
    params = make_params(kp)
    packed = pack_params(params)

    out = jax.block_until_ready(jax.jit(hyperdqn_forward)(x, z, packed))
    ref = reference(x, z, params)

    assert out.shape == (B, MODEL_DIMS[-1])
    assert bool(jnp.allclose(out, ref, atol=1e-4, rtol=1e-4)), "mismatch vs reference"
    print("KERNEL_OK")
</pallas_src>

<mosaic_0001>
module attributes {stable_mosaic.version = 11 : i64} {
  func.func @hyperdqn_kernel(%arg0: memref<8x40xf32, #tpu.memory_space<vmem>>, %arg1: memref<8x16xf32, #tpu.memory_space<vmem>>, %arg2: memref<16x72xf32, #tpu.memory_space<vmem>>, %arg3: memref<512x40xf32, #tpu.memory_space<vmem>>, %arg4: memref<40x40xf32, #tpu.memory_space<vmem>>, %arg5: memref<72x40xf32, #tpu.memory_space<vmem>>, %arg6: memref<16x72xf32, #tpu.memory_space<vmem>>, %arg7: memref<1024x8xf32, #tpu.memory_space<vmem>>, %arg8: memref<40x8xf32, #tpu.memory_space<vmem>>, %arg9: memref<72x8xf32, #tpu.memory_space<vmem>>, %arg10: memref<8x8xf32, #tpu.memory_space<vmem>>) attributes {dimension_semantics = [], scalar_prefetch = 0 : i64, scratch_operands = 0 : i64, tpu.core_type = #tpu.core_type<tc>} {
    %c0 = arith.constant 0 : index
    %c0_0 = arith.constant 0 : index
    %0 = vector.load %arg0[%c0, %c0_0] : memref<8x40xf32, #tpu.memory_space<vmem>>, vector<8x40xf32>
    %c0_1 = arith.constant 0 : index
    %c0_2 = arith.constant 0 : index
    %1 = vector.load %arg1[%c0_1, %c0_2] : memref<8x16xf32, #tpu.memory_space<vmem>>, vector<8x16xf32>
    %c0_3 = arith.constant 0 : index
    %c0_4 = arith.constant 0 : index
    %2 = vector.load %arg2[%c0_3, %c0_4] : memref<16x72xf32, #tpu.memory_space<vmem>>, vector<16x72xf32>
    %cst = arith.constant dense<0.000000e+00> : vector<8x72xf32>
    %3 = tpu.matmul %1, %2, %cst {dimension_numbers = #tpu.dot_dimension_numbers<[1], [0], [0], [1], [0, 0, 1, 1], [], []>} : vector<8x16xf32>, vector<16x72xf32>, vector<8x72xf32> -> vector<8x72xf32>
    %cst_5 = arith.constant 0.000000e+00 : f32
    %4 = vector.broadcast %cst_5 : f32 to vector<8x72xf32>
    %5 = arith.maximumf %3, %4 : vector<8x72xf32>
    %6 = tpu.iota {dimensions = array<i32: 1>} : vector<16x512xi32>
    %7 = tpu.iota {dimensions = array<i32: 0>} : vector<16x512xi32>
    %c15_i32 = arith.constant 15 : i32
    %8 = vector.broadcast %c15_i32 : i32 to vector<16x512xi32>
    %9 = arith.andi %6, %8 : vector<16x512xi32>
    %10 = arith.cmpi eq, %9, %7 : vector<16x512xi32>
    %cst_6 = arith.constant 1.000000e+00 : f32
    %cst_7 = arith.constant 0.000000e+00 : f32
    %11 = vector.broadcast %cst_6 : f32 to vector<16x512xf32>
    %12 = vector.broadcast %cst_7 : f32 to vector<16x512xf32>
    %13 = arith.select %10, %11, %12 : vector<16x512xi1>, vector<16x512xf32>
    %14 = vector.extract_strided_slice %0 {offsets = [0, 0], sizes = [8, 16], strides = [1, 1]} : vector<8x40xf32> to vector<8x16xf32>
    %cst_8 = arith.constant dense<0.000000e+00> : vector<8x512xf32>
    %15 = tpu.matmul %14, %13, %cst_8 {dimension_numbers = #tpu.dot_dimension_numbers<[1], [0], [0], [1], [0, 0, 1, 1], [], []>} : vector<8x16xf32>, vector<16x512xf32>, vector<8x512xf32> -> vector<8x512xf32>
    %16 = tpu.iota {dimensions = array<i32: 1>} : vector<32x512xi32>
    %17 = tpu.iota {dimensions = array<i32: 0>} : vector<32x512xi32>
    %c4_i32 = arith.constant 4 : i32
    %18 = vector.broadcast %c4_i32 : i32 to vector<32x512xi32>
    %19 = arith.shrsi %16, %18 : vector<32x512xi32>
    %20 = arith.cmpi eq, %19, %17 : vector<32x512xi32>
    %cst_9 = arith.constant 1.000000e+00 : f32
    %cst_10 = arith.constant 0.000000e+00 : f32
    %21 = vector.broadcast %cst_9 : f32 to vector<32x512xf32>
    %22 = vector.broadcast %cst_10 : f32 to vector<32x512xf32>
    %23 = arith.select %20, %21, %22 : vector<32x512xi1>, vector<32x512xf32>
    %24 = vector.extract_strided_slice %5 {offsets = [0, 0], sizes = [8, 32], strides = [1, 1]} : vector<8x72xf32> to vector<8x32xf32>
    %cst_11 = arith.constant dense<0.000000e+00> : vector<8x512xf32>
    %25 = tpu.matmul %24, %23, %cst_11 {dimension_numbers = #tpu.dot_dimension_numbers<[1], [0], [0], [1], [0, 0, 1, 1], [], []>} : vector<8x32xf32>, vector<32x512xf32>, vector<8x512xf32> -> vector<8x512xf32>
    %26 = arith.mulf %15, %25 : vector<8x512xf32>
    %c0_12 = arith.constant 0 : index
    %c0_13 = arith.constant 0 : index
    %27 = vector.load %arg3[%c0_12, %c0_13] : memref<512x40xf32, #tpu.memory_space<vmem>>, vector<512x40xf32>
    %cst_14 = arith.constant dense<0.000000e+00> : vector<8x40xf32>
    %28 = tpu.matmul %26, %27, %cst_14 {dimension_numbers = #tpu.dot_dimension_numbers<[1], [0], [0], [1], [0, 0, 1, 1], [], []>} : vector<8x512xf32>, vector<512x40xf32>, vector<8x40xf32> -> vector<8x40xf32>
    %c0_15 = arith.constant 0 : index
    %c0_16 = arith.constant 0 : index
    %29 = vector.load %arg4[%c0_15, %c0_16] : memref<40x40xf32, #tpu.memory_space<vmem>>, vector<40x40xf32>
    %cst_17 = arith.constant dense<0.000000e+00> : vector<8x40xf32>
    %30 = tpu.matmul %0, %29, %cst_17 {dimension_numbers = #tpu.dot_dimension_numbers<[1], [0], [0], [1], [0, 0, 1, 1], [], []>} : vector<8x40xf32>, vector<40x40xf32>, vector<8x40xf32> -> vector<8x40xf32>
    %31 = arith.addf %28, %30 : vector<8x40xf32>
    %c0_18 = arith.constant 0 : index
    %c0_19 = arith.constant 0 : index
    %32 = vector.load %arg5[%c0_18, %c0_19] : memref<72x40xf32, #tpu.memory_space<vmem>>, vector<72x40xf32>
    %cst_20 = arith.constant dense<0.000000e+00> : vector<8x40xf32>
    %33 = tpu.matmul %5, %32, %cst_20 {dimension_numbers = #tpu.dot_dimension_numbers<[1], [0], [0], [1], [0, 0, 1, 1], [], []>} : vector<8x72xf32>, vector<72x40xf32>, vector<8x40xf32> -> vector<8x40xf32>
    %34 = arith.addf %31, %33 : vector<8x40xf32>
    %cst_21 = arith.constant 0.000000e+00 : f32
    %35 = vector.broadcast %cst_21 : f32 to vector<8x40xf32>
    %36 = arith.maximumf %34, %35 : vector<8x40xf32>
    %c0_22 = arith.constant 0 : index
    %c0_23 = arith.constant 0 : index
    %37 = vector.load %arg6[%c0_22, %c0_23] : memref<16x72xf32, #tpu.memory_space<vmem>>, vector<16x72xf32>
    %cst_24 = arith.constant dense<0.000000e+00> : vector<8x72xf32>
    %38 = tpu.matmul %1, %37, %cst_24 {dimension_numbers = #tpu.dot_dimension_numbers<[1], [0], [0], [1], [0, 0, 1, 1], [], []>} : vector<8x16xf32>, vector<16x72xf32>, vector<8x72xf32> -> vector<8x72xf32>
    %cst_25 = arith.constant 0.000000e+00 : f32
    %39 = vector.broadcast %cst_25 : f32 to vector<8x72xf32>
    %40 = arith.maximumf %38, %39 : vector<8x72xf32>
    %41 = tpu.iota {dimensions = array<i32: 1>} : vector<32x1024xi32>
    %42 = tpu.iota {dimensions = array<i32: 0>} : vector<32x1024xi32>
    %c31_i32 = arith.constant 31 : i32
    %43 = vector.broadcast %c31_i32 : i32 to vector<32x1024xi32>
    %44 = arith.andi %41, %43 : vector<32x1024xi32>
    %45 = arith.cmpi eq, %44, %42 : vector<32x1024xi32>
    %cst_26 = arith.constant 1.000000e+00 : f32
    %cst_27 = arith.constant 0.000000e+00 : f32
    %46 = vector.broadcast %cst_26 : f32 to vector<32x1024xf32>
    %47 = vector.broadcast %cst_27 : f32 to vector<32x1024xf32>
    %48 = arith.select %45, %46, %47 : vector<32x1024xi1>, vector<32x1024xf32>
    %49 = vector.extract_strided_slice %36 {offsets = [0, 0], sizes = [8, 32], strides = [1, 1]} : vector<8x40xf32> to vector<8x32xf32>
    %cst_28 = arith.constant dense<0.000000e+00> : vector<8x1024xf32>
    %50 = tpu.matmul %49, %48, %cst_28 {dimension_numbers = #tpu.dot_dimension_numbers<[1], [0], [0], [1], [0, 0, 1, 1], [], []>} : vector<8x32xf32>, vector<32x1024xf32>, vector<8x1024xf32> -> vector<8x1024xf32>
    %51 = tpu.iota {dimensions = array<i32: 1>} : vector<32x1024xi32>
    %52 = tpu.iota {dimensions = array<i32: 0>} : vector<32x1024xi32>
    %c5_i32 = arith.constant 5 : i32
    %53 = vector.broadcast %c5_i32 : i32 to vector<32x1024xi32>
    %54 = arith.shrsi %51, %53 : vector<32x1024xi32>
    %55 = arith.cmpi eq, %54, %52 : vector<32x1024xi32>
    %cst_29 = arith.constant 1.000000e+00 : f32
    %cst_30 = arith.constant 0.000000e+00 : f32
    %56 = vector.broadcast %cst_29 : f32 to vector<32x1024xf32>
    %57 = vector.broadcast %cst_30 : f32 to vector<32x1024xf32>
    %58 = arith.select %55, %56, %57 : vector<32x1024xi1>, vector<32x1024xf32>
    %59 = vector.extract_strided_slice %40 {offsets = [0, 0], sizes = [8, 32], strides = [1, 1]} : vector<8x72xf32> to vector<8x32xf32>
    %cst_31 = arith.constant dense<0.000000e+00> : vector<8x1024xf32>
    %60 = tpu.matmul %59, %58, %cst_31 {dimension_numbers = #tpu.dot_dimension_numbers<[1], [0], [0], [1], [0, 0, 1, 1], [], []>} : vector<8x32xf32>, vector<32x1024xf32>, vector<8x1024xf32> -> vector<8x1024xf32>
    %61 = arith.mulf %50, %60 : vector<8x1024xf32>
    %c0_32 = arith.constant 0 : index
    %c0_33 = arith.constant 0 : index
    %62 = vector.load %arg7[%c0_32, %c0_33] : memref<1024x8xf32, #tpu.memory_space<vmem>>, vector<1024x8xf32>
    %cst_34 = arith.constant dense<0.000000e+00> : vector<8x8xf32>
    %63 = tpu.matmul %61, %62, %cst_34 {dimension_numbers = #tpu.dot_dimension_numbers<[1], [0], [0], [1], [0, 0, 1, 1], [], []>} : vector<8x1024xf32>, vector<1024x8xf32>, vector<8x8xf32> -> vector<8x8xf32>
    %c0_35 = arith.constant 0 : index
    %c0_36 = arith.constant 0 : index
    %64 = vector.load %arg8[%c0_35, %c0_36] : memref<40x8xf32, #tpu.memory_space<vmem>>, vector<40x8xf32>
    %cst_37 = arith.constant dense<0.000000e+00> : vector<8x8xf32>
    %65 = tpu.matmul %36, %64, %cst_37 {dimension_numbers = #tpu.dot_dimension_numbers<[1], [0], [0], [1], [0, 0, 1, 1], [], []>} : vector<8x40xf32>, vector<40x8xf32>, vector<8x8xf32> -> vector<8x8xf32>
    %66 = arith.addf %63, %65 : vector<8x8xf32>
    %c0_38 = arith.constant 0 : index
    %c0_39 = arith.constant 0 : index
    %67 = vector.load %arg9[%c0_38, %c0_39] : memref<72x8xf32, #tpu.memory_space<vmem>>, vector<72x8xf32>
    %cst_40 = arith.constant dense<0.000000e+00> : vector<8x8xf32>
    %68 = tpu.matmul %40, %67, %cst_40 {dimension_numbers = #tpu.dot_dimension_numbers<[1], [0], [0], [1], [0, 0, 1, 1], [], []>} : vector<8x72xf32>, vector<72x8xf32>, vector<8x8xf32> -> vector<8x8xf32>
    %69 = arith.addf %66, %68 : vector<8x8xf32>
    %cst_41 = arith.constant 0.000000e+00 : f32
    %70 = vector.broadcast %cst_41 : f32 to vector<8x8xf32>
    %71 = arith.maximumf %69, %70 : vector<8x8xf32>
    %c0_42 = arith.constant 0 : index
    %c0_43 = arith.constant 0 : index
    %72 = vector.load %arg10[%c0_42, %c0_43] : memref<8x8xf32, #tpu.memory_space<vmem>>, vector<8x8xf32>
    tpu.vector_store %arg10[%c0_42, %c0_43], %71 {strides = array<i32>} : memref<8x8xf32, #tpu.memory_space<vmem>>, vector<8x8xf32>,
    return
  }
}

</mosaic_0001>

<llo_original>
// kernel: hyperdqn_forward.1
$region0: #{hyperdqn_forward.1}
  #allocation0 [shape = 'u32[]', space=smem, size = 0x4, offset = 0x4, fixed_abs, tag = 'smem constant byte address 0x4 - core index']
  #allocation1 [shape = 'u32[72,128]{1,0:T(1,128)}', space=vmem, size = 0x9000, scoped, tag = 'internal scratch']
  %s0 = inlined_call_operand.vmem [shape: f32[8,40], index: 0, kind: input, shape index: {}]
  %s1 = inlined_call_operand.vmem [shape: f32[8,16], index: 1, kind: input, shape index: {}]
  %s2 = inlined_call_operand.vmem [shape: f32[16,72], index: 2, kind: input, shape index: {}]
  %s3 = inlined_call_operand.vmem [shape: f32[512,40], index: 3, kind: input, shape index: {}]
  %s4 = inlined_call_operand.vmem [shape: f32[40,40], index: 4, kind: input, shape index: {}]
  %s5 = inlined_call_operand.vmem [shape: f32[72,40], index: 5, kind: input, shape index: {}]
  %s6 = inlined_call_operand.vmem [shape: f32[16,72], index: 6, kind: input, shape index: {}]
  %s7 = inlined_call_operand.vmem [shape: f32[1024,8], index: 7, kind: input, shape index: {}]
  %s8 = inlined_call_operand.vmem [shape: f32[40,8], index: 8, kind: input, shape index: {}]
  %s9 = inlined_call_operand.vmem [shape: f32[72,8], index: 9, kind: input, shape index: {}]
  %s10 = inlined_call_operand.hbm [shape: f32[8,8], index: 10, kind: output, shape index: {}]
  %s11 = sld [smem:[#allocation0]]
  $region50: #{hyperdqn_forward.1} parent=0
    _
  %s13 = ssub.s32 1, %s11
  %s14 = scalar_select 0, %s13, %s11
  $region1: #{hyperdqn_forward.1} parent=0
    #allocation2 [shape = 'u8[4096]{0}', space=vmem, size = 0x1000, scoped, tag = 'output window, operand 0, single buffered']
    #allocation3 [shape = 's32[1]{0}', space=sflag, size = 0x4, scoped, tag = 'scoped memory for hyperdqn_forward.1']
    %15 = vsyncpa [#allocation3], 0
    // Predicated region
    $region2: #{hyperdqn_forward.1} parent=1 // pred_check
      _
    $region3: #{hyperdqn_forward.1} parent=1 // pred_check_branch
      %17 = sbr.rel (0) target = $region5
    $region4: #{hyperdqn_forward.1} parent=1 // pred_region
      _
    $region5: #{hyperdqn_forward.1} parent=1 // pred_fallthru
      _
    // Predicated region
    $region6: #{hyperdqn_forward.1} parent=1 // pred_check
      _
    $region7: #{hyperdqn_forward.1} parent=1 // pred_check_branch
      %19 = sbr.rel (0) target = $region9
    $region8: #{hyperdqn_forward.1} parent=1 // pred_region
      _
    $region9: #{hyperdqn_forward.1} parent=1 // pred_fallthru
      _
    // Predicated region
    $region10: #{hyperdqn_forward.1} parent=1 // pred_check
      _
    $region11: #{hyperdqn_forward.1} parent=1 // pred_check_branch
      %21 = sbr.rel (0) target = $region13
    $region12: #{hyperdqn_forward.1} parent=1 // pred_region
      _
    $region13: #{hyperdqn_forward.1} parent=1 // pred_fallthru
      _
    // Predicated region
    $region14: #{hyperdqn_forward.1} parent=1 // pred_check
      _
    $region15: #{hyperdqn_forward.1} parent=1 // pred_check_branch
      %23 = sbr.rel (0) target = $region17
    $region16: #{hyperdqn_forward.1} parent=1 // pred_region
      _
    $region17: #{hyperdqn_forward.1} parent=1 // pred_fallthru
      _
    // Predicated region
    $region18: #{hyperdqn_forward.1} parent=1 // pred_check
      _
    $region19: #{hyperdqn_forward.1} parent=1 // pred_check_branch
      %25 = sbr.rel (0) target = $region21
    $region20: #{hyperdqn_forward.1} parent=1 // pred_region
      _
    $region21: #{hyperdqn_forward.1} parent=1 // pred_fallthru
      _
    // Predicated region
    $region22: #{hyperdqn_forward.1} parent=1 // pred_check
      _
    $region23: #{hyperdqn_forward.1} parent=1 // pred_check_branch
      %27 = sbr.rel (0) target = $region25
    $region24: #{hyperdqn_forward.1} parent=1 // pred_region
      _
    $region25: #{hyperdqn_forward.1} parent=1 // pred_fallthru
      _
    // Predicated region
    $region26: #{hyperdqn_forward.1} parent=1 // pred_check
      _
    $region27: #{hyperdqn_forward.1} parent=1 // pred_check_branch
      %29 = sbr.rel (0) target = $region29
    $region28: #{hyperdqn_forward.1} parent=1 // pred_region
      _
    $region29: #{hyperdqn_forward.1} parent=1 // pred_fallthru
      _
    // Predicated region
    $region30: #{hyperdqn_forward.1} parent=1 // pred_check
      _
    $region31: #{hyperdqn_forward.1} parent=1 // pred_check_branch
      %31 = sbr.rel (0) target = $region33
    $region32: #{hyperdqn_forward.1} parent=1 // pred_region
      _
    $region33: #{hyperdqn_forward.1} parent=1 // pred_fallthru
      _
    // Predicated region
    $region34: #{hyperdqn_forward.1} parent=1 // pred_check
      _
    $region35: #{hyperdqn_forward.1} parent=1 // pred_check_branch
      %33 = sbr.rel (0) target = $region37
    $region36: #{hyperdqn_forward.1} parent=1 // pred_region
      _
    $region37: #{hyperdqn_forward.1} parent=1 // pred_fallthru
      _
    // Predicated region
    $region38: #{hyperdqn_forward.1} parent=1 // pred_check
      _
    $region39: #{hyperdqn_forward.1} parent=1 // pred_check_branch
      %35 = sbr.rel (0) target = $region41
    $region40: #{hyperdqn_forward.1} parent=1 // pred_region
      _
    $region41: #{hyperdqn_forward.1} parent=1 // pred_fallthru
      _
    %v36 = vld [vmem:[%s0] sm:$0xff]
    %v37 = vld [vmem:[%s1] sm:$0xff]
    %v38 = vld [vmem:[%s2] sm:$0xff]
    %v39 = vld [vmem:[%s2 + $0x8] sm:$0xff]
    %vm40 = vcmask 130048
    %v42 = vsel %vm40, %v37, 0
    %44 = vmatpush.msra.mxu0 0.0
    %45 = vmatpush.msra.mxu0 0.0
    %46 = vmatpush.msra.mxu0 0.0
    %47 = vmatpush.msra.mxu0 0.0
    %48 = vmatpush.msra.mxu0 0.0
    %49 = vmatpush.msra.mxu0 0.0
    %50 = vmatpush.msra.mxu0 0.0
    %51 = vmatpush.msra.mxu0 0.0
    %52 = vmatpush.msra.mxu0 0.0
    %53 = vmatpush.msra.mxu0 0.0
    %54 = vmatpush.msra.mxu0 0.0
    %55 = vmatpush.msra.mxu0 0.0
    %56 = vmatpush.msra.mxu0 0.0
    %57 = vmatpush.msra.mxu0 0.0
    %58 = vmatpush.msra.mxu0 %v39
    %59 = vmatpush.msra.mxu0 %v38
    %60 = vmatmul.f32.gmra.mxu0 %v42
    %v61 = vpop.f32.mrf.mxu0
    %v62 = vadd.f32 0.0, %v61
    %63 = vdwg.mxu0
    %v64 = vmax.f32 %v62, 0.0
    %v65 = vlaneseq
    %v66 = vand.u32 %v65, 127
    %v67 = vadd.s32 %v66, 128
    %v68 = vadd.s32 %v66, 256
    %v69 = vadd.s32 %v66, 384
    %v70 = vlaneseq
    %v71 = vshrl.u32 %v70, 7
    %v72 = vadd.s32 %v71, 8
    %v73 = vand.u32 %v66, 15
    %v74 = vand.u32 %v67, 15
    %v75 = vand.u32 %v68, 15
    %v76 = vand.u32 %v69, 15
    %vm77 = vcmp.eq.s32.totalorder %v73, %v71
    %vm78 = vcmp.eq.s32.totalorder %v74, %v71
    %vm79 = vcmp.eq.s32.totalorder %v75, %v71
    %vm80 = vcmp.eq.s32.totalorder %v76, %v71
    %vm81 = vcmp.eq.s32.totalorder %v73, %v72
    %vm82 = vcmp.eq.s32.totalorder %v74, %v72
    %vm83 = vcmp.eq.s32.totalorder %v75, %v72
    %vm84 = vcmp.eq.s32.totalorder %v76, %v72
    %v85 = vsel %vm77, 1.0, 0.0
    %v86 = vsel %vm78, 1.0, 0.0
    %v87 = vsel %vm79, 1.0, 0.0
    %v88 = vsel %vm80, 1.0, 0.0
    %v89 = vsel %vm81, 1.0, 0.0
    %v90 = vsel %vm82, 1.0, 0.0
    %v91 = vsel %vm83, 1.0, 0.0
    %v92 = vsel %vm84, 1.0, 0.0
    %v94 = vsel %vm40, %v36, 0
    %96 = vmatpush.msra.mxu0 0.0
    %97 = vmatpush.msra.mxu0 0.0
    %98 = vmatpush.msra.mxu0 0.0
    %99 = vmatpush.msra.mxu0 0.0
    %100 = vmatpush.msra.mxu0 0.0
    %101 = vmatpush.msra.mxu0 0.0
    %102 = vmatpush.msra.mxu0 0.0
    %103 = vmatpush.msra.mxu0 0.0
    %104 = vmatpush.msra.mxu0 0.0
    %105 = vmatpush.msra.mxu0 0.0
    %106 = vmatpush.msra.mxu0 0.0
    %107 = vmatpush.msra.mxu0 0.0
    %108 = vmatpush.msra.mxu0 0.0
    %109 = vmatpush.msra.mxu0 0.0
    %110 = vmatpush.msra.mxu0 %v89
    %111 = vmatpush.msra.mxu0 %v85
    %112 = vmatmul.f32.gmra.mxu0 %v94
    %v113 = vpop.f32.mrf.mxu0
    %v114 = vadd.f32 0.0, %v113
    %115 = vdwg.mxu0
    %116 = vmatpush.msra.mxu0 0.0
    %117 = vmatpush.msra.mxu0 0.0
    %118 = vmatpush.msra.mxu0 0.0
    %119 = vmatpush.msra.mxu0 0.0
    %120 = vmatpush.msra.mxu0 0.0
    %121 = vmatpush.msra.mxu0 0.0
    %122 = vmatpush.msra.mxu0 0.0
    %123 = vmatpush.msra.mxu0 0.0
    %124 = vmatpush.msra.mxu0 0.0
    %125 = vmatpush.msra.mxu0 0.0
    %126 = vmatpush.msra.mxu0 0.0
    %127 = vmatpush.msra.mxu0 0.0
    %128 = vmatpush.msra.mxu0 0.0
    %129 = vmatpush.msra.mxu0 0.0
    %130 = vmatpush.msra.mxu0 %v90
    %131 = vmatpush.msra.mxu0 %v86
    %132 = vmatmul.f32.gmra.mxu0 %v94
    %v133 = vpop.f32.mrf.mxu0
    %v134 = vadd.f32 0.0, %v133
    %135 = vdwg.mxu0
    %136 = vmatpush.msra.mxu0 0.0
    %137 = vmatpush.msra.mxu0 0.0
    %138 = vmatpush.msra.mxu0 0.0
    %139 = vmatpush.msra.mxu0 0.0
    %140 = vmatpush.msra.mxu0 0.0
    %141 = vmatpush.msra.mxu0 0.0
    %142 = vmatpush.msra.mxu0 0.0
    %143 = vmatpush.msra.mxu0 0.0
    %144 = vmatpush.msra.mxu0 0.0
    %145 = vmatpush.msra.mxu0 0.0
    %146 = vmatpush.msra.mxu0 0.0
    %147 = vmatpush.msra.mxu0 0.0
    %148 = vmatpush.msra.mxu0 0.0
    %149 = vmatpush.msra.mxu0 0.0
    %150 = vmatpush.msra.mxu0 %v91
    %151 = vmatpush.msra.mxu0 %v87
    %152 = vmatmul.f32.gmra.mxu0 %v94
    %v153 = vpop.f32.mrf.mxu0
    %v154 = vadd.f32 0.0, %v153
    %155 = vdwg.mxu0
    %156 = vmatpush.msra.mxu0 0.0
    %157 = vmatpush.msra.mxu0 0.0
    %158 = vmatpush.msra.mxu0 0.0
    %159 = vmatpush.msra.mxu0 0.0
    %160 = vmatpush.msra.mxu0 0.0
    %161 = vmatpush.msra.mxu0 0.0
    %162 = vmatpush.msra.mxu0 0.0
    %163 = vmatpush.msra.mxu0 0.0
    %164 = vmatpush.msra.mxu0 0.0
    %165 = vmatpush.msra.mxu0 0.0
    %166 = vmatpush.msra.mxu0 0.0
    %167 = vmatpush.msra.mxu0 0.0
    %168 = vmatpush.msra.mxu0 0.0
    %169 = vmatpush.msra.mxu0 0.0
    %170 = vmatpush.msra.mxu0 %v92
    %171 = vmatpush.msra.mxu0 %v88
    %172 = vmatmul.f32.gmra.mxu0 %v94
    %v173 = vpop.f32.mrf.mxu0
    %v174 = vadd.f32 0.0, %v173
    %175 = vdwg.mxu0
    %v176 = vadd.s32 %v71, 16
    %v177 = vadd.s32 %v71, 24
    %v178 = vshra.s32 %v66, 4
    %v179 = vshra.s32 %v67, 4
    %v180 = vshra.s32 %v68, 4
    %v181 = vshra.s32 %v69, 4
    %vm182 = vcmp.eq.s32.totalorder %v178, %v71
    %vm183 = vcmp.eq.s32.totalorder %v179, %v71
    %vm184 = vcmp.eq.s32.totalorder %v180, %v71
    %vm185 = vcmp.eq.s32.totalorder %v181, %v71
    %vm186 = vcmp.eq.s32.totalorder %v178, %v72
    %vm187 = vcmp.eq.s32.totalorder %v179, %v72
    %vm188 = vcmp.eq.s32.totalorder %v180, %v72
    %vm189 = vcmp.eq.s32.totalorder %v181, %v72
    %vm190 = vcmp.eq.s32.totalorder %v178, %v176
    %vm191 = vcmp.eq.s32.totalorder %v179, %v176
    %vm192 = vcmp.eq.s32.totalorder %v180, %v176
    %vm193 = vcmp.eq.s32.totalorder %v181, %v176
    %vm194 = vcmp.eq.s32.totalorder %v178, %v177
    %vm195 = vcmp.eq.s32.totalorder %v179, %v177
    %vm196 = vcmp.eq.s32.totalorder %v180, %v177
    %vm197 = vcmp.eq.s32.totalorder %v181, %v177
    %v198 = vsel %vm182, 1.0, 0.0
    %v199 = vsel %vm183, 1.0, 0.0
    %v200 = vsel %vm184, 1.0, 0.0
    %v201 = vsel %vm185, 1.0, 0.0
    %v202 = vsel %vm186, 1.0, 0.0
    %v203 = vsel %vm187, 1.0, 0.0
    %v204 = vsel %vm188, 1.0, 0.0
    %v205 = vsel %vm189, 1.0, 0.0
    %v206 = vsel %vm190, 1.0, 0.0
    %v207 = vsel %vm191, 1.0, 0.0
    %v208 = vsel %vm192, 1.0, 0.0
    %v209 = vsel %vm193, 1.0, 0.0
    %v210 = vsel %vm194, 1.0, 0.0
    %v211 = vsel %vm195, 1.0, 0.0
    %v212 = vsel %vm196, 1.0, 0.0
    %v213 = vsel %vm197, 1.0, 0.0
    %vm214 = vcmask 261120
    %v216 = vsel %vm214, %v64, 0
    %218 = vmatpush.msra.mxu0 0.0
    %219 = vmatpush.msra.mxu0 0.0
    %220 = vmatpush.msra.mxu0 0.0
    %221 = vmatpush.msra.mxu0 0.0
    %222 = vmatpush.msra.mxu0 0.0
    %223 = vmatpush.msra.mxu0 0.0
    %224 = vmatpush.msra.mxu0 0.0
    %225 = vmatpush.msra.mxu0 0.0
    %226 = vmatpush.msra.mxu0 0.0
    %227 = vmatpush.msra.mxu0 0.0
    %228 = vmatpush.msra.mxu0 0.0
    %229 = vmatpush.msra.mxu0 0.0
    %230 = vmatpush.msra.mxu0 %v210
    %231 = vmatpush.msra.mxu0 %v206
    %232 = vmatpush.msra.mxu0 %v202
    %233 = vmatpush.msra.mxu0 %v198
    %234 = vmatmul.f32.gmra.mxu0 %v216
    %v235 = vpop.f32.mrf.mxu0
    %v236 = vadd.f32 0.0, %v235
    %237 = vdwg.mxu0
    %238 = vmatpush.msra.mxu0 0.0
    %239 = vmatpush.msra.mxu0 0.0
    %240 = vmatpush.msra.mxu0 0.0
    %241 = vmatpush.msra.mxu0 0.0
    %242 = vmatpush.msra.mxu0 0.0
    %243 = vmatpush.msra.mxu0 0.0
    %244 = vmatpush.msra.mxu0 0.0
    %245 = vmatpush.msra.mxu0 0.0
    %246 = vmatpush.msra.mxu0 0.0
    %247 = vmatpush.msra.mxu0 0.0
    %248 = vmatpush.msra.mxu0 0.0
    %249 = vmatpush.msra.mxu0 0.0
    %250 = vmatpush.msra.mxu0 %v211
    %251 = vmatpush.msra.mxu0 %v207
    %252 = vmatpush.msra.mxu0 %v203
    %253 = vmatpush.msra.mxu0 %v199
    %254 = vmatmul.f32.gmra.mxu0 %v216
    %v255 = vpop.f32.mrf.mxu0
    %v256 = vadd.f32 0.0, %v255
    %257 = vdwg.mxu0
    %258 = vmatpush.msra.mxu0 0.0
    %259 = vmatpush.msra.mxu0 0.0
    %260 = vmatpush.msra.mxu0 0.0
    %261 = vmatpush.msra.mxu0 0.0
    %262 = vmatpush.msra.mxu0 0.0
    %263 = vmatpush.msra.mxu0 0.0
    %264 = vmatpush.msra.mxu0 0.0
    %265 = vmatpush.msra.mxu0 0.0
    %266 = vmatpush.msra.mxu0 0.0
    %267 = vmatpush.msra.mxu0 0.0
    %268 = vmatpush.msra.mxu0 0.0
    %269 = vmatpush.msra.mxu0 0.0
    %270 = vmatpush.msra.mxu0 %v212
    %271 = vmatpush.msra.mxu0 %v208
    %272 = vmatpush.msra.mxu0 %v204
    %273 = vmatpush.msra.mxu0 %v200
    %274 = vmatmul.f32.gmra.mxu0 %v216
    %v275 = vpop.f32.mrf.mxu0
    %v276 = vadd.f32 0.0, %v275
    %277 = vdwg.mxu0
    %278 = vmatpush.msra.mxu0 0.0
    %279 = vmatpush.msra.mxu0 0.0
    %280 = vmatpush.msra.mxu0 0.0
    %281 = vmatpush.msra.mxu0 0.0
    %282 = vmatpush.msra.mxu0 0.0
    %283 = vmatpush.msra.mxu0 0.0
    %284 = vmatpush.msra.mxu0 0.0
    %285 = vmatpush.msra.mxu0 0.0
    %286 = vmatpush.msra.mxu0 0.0
    %287 = vmatpush.msra.mxu0 0.0
    %288 = vmatpush.msra.mxu0 0.0
    %289 = vmatpush.msra.mxu0 0.0
    %290 = vmatpush.msra.mxu0 %v213
    %291 = vmatpush.msra.mxu0 %v209
    %292 = vmatpush.msra.mxu0 %v205
    %293 = vmatpush.msra.mxu0 %v201
    %294 = vmatmul.f32.gmra.mxu0 %v216
    %v295 = vpop.f32.mrf.mxu0
    %v296 = vadd.f32 0.0, %v295
    %297 = vdwg.mxu0
    %v298 = vmul.f32 %v114, %v236
    %v299 = vmul.f32 %v134, %v256
    %v300 = vmul.f32 %v154, %v276
    %v301 = vmul.f32 %v174, %v296
    %v302 = vld [vmem:[%s3] sm:$0xff]
    %v303 = vld [vmem:[%s3 + $0x8] sm:$0xff]
    %v304 = vld [vmem:[%s3 + $0x10] sm:$0xff]
    %v305 = vld [vmem:[%s3 + $0x18] sm:$0xff]
    %v306 = vld [vmem:[%s3 + $0x20] sm:$0xff]
    %v307 = vld [vmem:[%s3 + $0x28] sm:$0xff]
    %v308 = vld [vmem:[%s3 + $0x30] sm:$0xff]
    %v309 = vld [vmem:[%s3 + $0x38] sm:$0xff]
    %v310 = vld [vmem:[%s3 + $0x40] sm:$0xff]
    %v311 = vld [vmem:[%s3 + $0x48] sm:$0xff]
    %v312 = vld [vmem:[%s3 + $0x50] sm:$0xff]
    %v313 = vld [vmem:[%s3 + $0x58] sm:$0xff]
    %v314 = vld [vmem:[%s3 + $0x60] sm:$0xff]
    %v315 = vld [vmem:[%s3 + $0x68] sm:$0xff]
    %v316 = vld [vmem:[%s3 + $0x70] sm:$0xff]
    %v317 = vld [vmem:[%s3 + $0x78] sm:$0xff]
    %v318 = vld [vmem:[%s3 + $0x80] sm:$0xff]
    %v319 = vld [vmem:[%s3 + $0x88] sm:$0xff]
    %v320 = vld [vmem:[%s3 + $0x90] sm:$0xff]
    %v321 = vld [vmem:[%s3 + $0x98] sm:$0xff]
    %v322 = vld [vmem:[%s3 + $0xa0] sm:$0xff]
    %v323 = vld [vmem:[%s3 + $0xa8] sm:$0xff]
    %v324 = vld [vmem:[%s3 + $0xb0] sm:$0xff]
    %v325 = vld [vmem:[%s3 + $0xb8] sm:$0xff]
    %v326 = vld [vmem:[%s3 + $0xc0] sm:$0xff]
    %v327 = vld [vmem:[%s3 + $0xc8] sm:$0xff]
    %v328 = vld [vmem:[%s3 + $0xd0] sm:$0xff]
    %v329 = vld [vmem:[%s3 + $0xd8] sm:$0xff]
    %v330 = vld [vmem:[%s3 + $0xe0] sm:$0xff]
    %v331 = vld [vmem:[%s3 + $0xe8] sm:$0xff]
    %v332 = vld [vmem:[%s3 + $0xf0] sm:$0xff]
    %v333 = vld [vmem:[%s3 + $0xf8] sm:$0xff]
    %v334 = vld [vmem:[%s3 + $0x100] sm:$0xff]
    %v335 = vld [vmem:[%s3 + $0x108] sm:$0xff]
    %v336 = vld [vmem:[%s3 + $0x110] sm:$0xff]
    %v337 = vld [vmem:[%s3 + $0x118] sm:$0xff]
    %v338 = vld [vmem:[%s3 + $0x120] sm:$0xff]
    %v339 = vld [vmem:[%s3 + $0x128] sm:$0xff]
    %v340 = vld [vmem:[%s3 + $0x130] sm:$0xff]
    %v341 = vld [vmem:[%s3 + $0x138] sm:$0xff]
    %v342 = vld [vmem:[%s3 + $0x140] sm:$0xff]
    %v343 = vld [vmem:[%s3 + $0x148] sm:$0xff]
    %v344 = vld [vmem:[%s3 + $0x150] sm:$0xff]
    %v345 = vld [vmem:[%s3 + $0x158] sm:$0xff]
    %v346 = vld [vmem:[%s3 + $0x160] sm:$0xff]
    %v347 = vld [vmem:[%s3 + $0x168] sm:$0xff]
    %v348 = vld [vmem:[%s3 + $0x170] sm:$0xff]
    %v349 = vld [vmem:[%s3 + $0x178] sm:$0xff]
    %v350 = vld [vmem:[%s3 + $0x180] sm:$0xff]
    %v351 = vld [vmem:[%s3 + $0x188] sm:$0xff]
    %v352 = vld [vmem:[%s3 + $0x190] sm:$0xff]
    %v353 = vld [vmem:[%s3 + $0x198] sm:$0xff]
    %v354 = vld [vmem:[%s3 + $0x1a0] sm:$0xff]
    %v355 = vld [vmem:[%s3 + $0x1a8] sm:$0xff]
    %v356 = vld [vmem:[%s3 + $0x1b0] sm:$0xff]
    %v357 = vld [vmem:[%s3 + $0x1b8] sm:$0xff]
    %v358 = vld [vmem:[%s3 + $0x1c0] sm:$0xff]
    %v359 = vld [vmem:[%s3 + $0x1c8] sm:$0xff]
    %v360 = vld [vmem:[%s3 + $0x1d0] sm:$0xff]
    %v361 = vld [vmem:[%s3 + $0x1d8] sm:$0xff]
    %v362 = vld [vmem:[%s3 + $0x1e0] sm:$0xff]
    %v363 = vld [vmem:[%s3 + $0x1e8] sm:$0xff]
    %v364 = vld [vmem:[%s3 + $0x1f0] sm:$0xff]
    %v365 = vld [vmem:[%s3 + $0x1f8] sm:$0xff]
    %v366 = vld [vmem:[%s4] sm:$0xff]
    %v367 = vld [vmem:[%s4 + $0x8] sm:$0xff]
    %v368 = vld [vmem:[%s4 + $0x10] sm:$0xff]
    %v369 = vld [vmem:[%s4 + $0x18] sm:$0xff]
    %v370 = vld [vmem:[%s4 + $0x20] sm:$0xff]
    %vm371 = vcmask 326656
    %v372 = vsel %vm371, %v36, 0
    %374 = vmatpush.msra.mxu0 0.0
    %375 = vmatpush.msra.mxu0 0.0
    %376 = vmatpush.msra.mxu0 0.0
    %377 = vmatpush.msra.mxu0 0.0
    %378 = vmatpush.msra.mxu0 0.0
    %379 = vmatpush.msra.mxu0 0.0
    %380 = vmatpush.msra.mxu0 0.0
    %381 = vmatpush.msra.mxu0 0.0
    %382 = vmatpush.msra.mxu0 0.0
    %383 = vmatpush.msra.mxu0 0.0
    %384 = vmatpush.msra.mxu0 0.0
    %385 = vmatpush.msra.mxu0 %v370
    %386 = vmatpush.msra.mxu0 %v369
    %387 = vmatpush.msra.mxu0 %v368
    %388 = vmatpush.msra.mxu0 %v367
    %389 = vmatpush.msra.mxu0 %v366
    %390 = vmatmul.f32.gmra.mxu0 %v372
    %v391 = vpop.f32.mrf.mxu0
    %v392 = vadd.f32 0.0, %v391
    %393 = vdwg.mxu0
    %394 = vmatpush.msra.mxu0 %v317
    %395 = vmatpush.msra.mxu0 %v316
    %396 = vmatpush.msra.mxu0 %v315
    %397 = vmatpush.msra.mxu0 %v314
    %398 = vmatpush.msra.mxu0 %v313
    %399 = vmatpush.msra.mxu0 %v312
    %400 = vmatpush.msra.mxu0 %v311
    %401 = vmatpush.msra.mxu0 %v310
    %402 = vmatpush.msra.mxu0 %v309
    %403 = vmatpush.msra.mxu0 %v308
    %404 = vmatpush.msra.mxu0 %v307
    %405 = vmatpush.msra.mxu0 %v306
    %406 = vmatpush.msra.mxu0 %v305
    %407 = vmatpush.msra.mxu0 %v304
    %408 = vmatpush.msra.mxu0 %v303
    %409 = vmatpush.msra.mxu0 %v302
    %410 = vmatmul.f32.gmra.mxu0 %v298
    %v411 = vpop.f32.mrf.mxu0
    %v412 = vadd.f32 %v392, %v411
    %413 = vdwg.mxu0
    %414 = vmatpush.msra.mxu0 %v333
    %415 = vmatpush.msra.mxu0 %v332
    %416 = vmatpush.msra.mxu0 %v331
    %417 = vmatpush.msra.mxu0 %v330
    %418 = vmatpush.msra.mxu0 %v329
    %419 = vmatpush.msra.mxu0 %v328
    %420 = vmatpush.msra.mxu0 %v327
    %421 = vmatpush.msra.mxu0 %v326
    %422 = vmatpush.msra.mxu0 %v325
    %423 = vmatpush.msra.mxu0 %v324
    %424 = vmatpush.msra.mxu0 %v323
    %425 = vmatpush.msra.mxu0 %v322
    %426 = vmatpush.msra.mxu0 %v321
    %427 = vmatpush.msra.mxu0 %v320
    %428 = vmatpush.msra.mxu0 %v319
    %429 = vmatpush.msra.mxu0 %v318
    %430 = vmatmul.f32.gmra.mxu0 %v299
    %v431 = vpop.f32.mrf.mxu0
    %v432 = vadd.f32 %v412, %v431
    %433 = vdwg.mxu0
    %434 = vmatpush.msra.mxu0 %v349
    %435 = vmatpush.msra.mxu0 %v348
    %436 = vmatpush.msra.mxu0 %v347
    %437 = vmatpush.msra.mxu0 %v346
    %438 = vmatpush.msra.mxu0 %v345
    %439 = vmatpush.msra.mxu0 %v344
    %440 = vmatpush.msra.mxu0 %v343
    %441 = vmatpush.msra.mxu0 %v342
    %442 = vmatpush.msra.mxu0 %v341
    %443 = vmatpush.msra.mxu0 %v340
    %444 = vmatpush.msra.mxu0 %v339
    %445 = vmatpush.msra.mxu0 %v338
    %446 = vmatpush.msra.mxu0 %v337
    %447 = vmatpush.msra.mxu0 %v336
    %448 = vmatpush.msra.mxu0 %v335
    %449 = vmatpush.msra.mxu0 %v334
    %450 = vmatmul.f32.gmra.mxu0 %v300
    %v451 = vpop.f32.mrf.mxu0
    %v452 = vadd.f32 %v432, %v451
    %453 = vdwg.mxu0
    %454 = vmatpush.msra.mxu0 %v365
    %455 = vmatpush.msra.mxu0 %v364
    %456 = vmatpush.msra.mxu0 %v363
    %457 = vmatpush.msra.mxu0 %v362
    %458 = vmatpush.msra.mxu0 %v361
    %459 = vmatpush.msra.mxu0 %v360
    %460 = vmatpush.msra.mxu0 %v359
    %461 = vmatpush.msra.mxu0 %v358
    %462 = vmatpush.msra.mxu0 %v357
    %463 = vmatpush.msra.mxu0 %v356
    %464 = vmatpush.msra.mxu0 %v355
    %465 = vmatpush.msra.mxu0 %v354
    %466 = vmatpush.msra.mxu0 %v353
    %467 = vmatpush.msra.mxu0 %v352
    %468 = vmatpush.msra.mxu0 %v351
    %469 = vmatpush.msra.mxu0 %v350
    %470 = vmatmul.f32.gmra.mxu0 %v301
    %v471 = vpop.f32.mrf.mxu0
    %v472 = vadd.f32 %v452, %v471
    %473 = vdwg.mxu0
    %v474 = vld [vmem:[%s5] sm:$0xff]
    %v475 = vld [vmem:[%s5 + $0x8] sm:$0xff]
    %v476 = vld [vmem:[%s5 + $0x10] sm:$0xff]
    %v477 = vld [vmem:[%s5 + $0x18] sm:$0xff]
    %v478 = vld [vmem:[%s5 + $0x20] sm:$0xff]
    %v479 = vld [vmem:[%s5 + $0x28] sm:$0xff]
    %v480 = vld [vmem:[%s5 + $0x30] sm:$0xff]
    %v481 = vld [vmem:[%s5 + $0x38] sm:$0xff]
    %v482 = vld [vmem:[%s5 + $0x40] sm:$0xff]
    %vm483 = vcmask 588800
    %v484 = vsel %vm483, %v64, 0
    %486 = vmatpush.msra.mxu0 0.0
    %487 = vmatpush.msra.mxu0 0.0
    %488 = vmatpush.msra.mxu0 0.0
    %489 = vmatpush.msra.mxu0 0.0
    %490 = vmatpush.msra.mxu0 0.0
    %491 = vmatpush.msra.mxu0 0.0
    %492 = vmatpush.msra.mxu0 0.0
    %493 = vmatpush.msra.mxu0 %v482
    %494 = vmatpush.msra.mxu0 %v481
    %495 = vmatpush.msra.mxu0 %v480
    %496 = vmatpush.msra.mxu0 %v479
    %497 = vmatpush.msra.mxu0 %v478
    %498 = vmatpush.msra.mxu0 %v477
    %499 = vmatpush.msra.mxu0 %v476
    %500 = vmatpush.msra.mxu0 %v475
    %501 = vmatpush.msra.mxu0 %v474
    %502 = vmatmul.f32.gmra.mxu0 %v484
    %v503 = vpop.f32.mrf.mxu0
    %v504 = vadd.f32 0.0, %v503
    %505 = vdwg.mxu0
    %v506 = vadd.f32 %v472, %v504
    %v507 = vmax.f32 %v506, 0.0
    %v508 = vld [vmem:[%s6] sm:$0xff]
    %v509 = vld [vmem:[%s6 + $0x8] sm:$0xff]
    %510 = vmatpush.msra.mxu0 0.0
    %511 = vmatpush.msra.mxu0 0.0
    %512 = vmatpush.msra.mxu0 0.0
    %513 = vmatpush.msra.mxu0 0.0
    %514 = vmatpush.msra.mxu0 0.0
    %515 = vmatpush.msra.mxu0 0.0
    %516 = vmatpush.msra.mxu0 0.0
    %517 = vmatpush.msra.mxu0 0.0
    %518 = vmatpush.msra.mxu0 0.0
    %519 = vmatpush.msra.mxu0 0.0
    %520 = vmatpush.msra.mxu0 0.0
    %521 = vmatpush.msra.mxu0 0.0
    %522 = vmatpush.msra.mxu0 0.0
    %523 = vmatpush.msra.mxu0 0.0
    %524 = vmatpush.msra.mxu0 %v509
    %525 = vmatpush.msra.mxu0 %v508
    %526 = vmatmul.f32.gmra.mxu0 %v42
    %v527 = vpop.f32.mrf.mxu0
    %v528 = vadd.f32 0.0, %v527
    %529 = vdwg.mxu0
    %v530 = vmax.f32 %v528, 0.0
    %v531 = vadd.s32 %v66, 512
    %v532 = vadd.s32 %v66, 640
    %v533 = vadd.s32 %v66, 768
    %v534 = vadd.s32 %v66, 896
    %v535 = vand.u32 %v66, 31
    %v536 = vand.u32 %v67, 31
    %v537 = vand.u32 %v68, 31
    %v538 = vand.u32 %v69, 31
    %v539 = vand.u32 %v531, 31
    %v540 = vand.u32 %v532, 31
    %v541 = vand.u32 %v533, 31
    %v542 = vand.u32 %v534, 31
    %vm543 = vcmp.eq.s32.totalorder %v535, %v71
    %vm544 = vcmp.eq.s32.totalorder %v536, %v71
    %vm545 = vcmp.eq.s32.totalorder %v537, %v71
    %vm546 = vcmp.eq.s32.totalorder %v538, %v71
    %vm547 = vcmp.eq.s32.totalorder %v539, %v71
    %vm548 = vcmp.eq.s32.totalorder %v540, %v71
    %vm549 = vcmp.eq.s32.totalorder %v541, %v71
    %vm550 = vcmp.eq.s32.totalorder %v542, %v71
    %vm551 = vcmp.eq.s32.totalorder %v535, %v72
    %vm552 = vcmp.eq.s32.totalorder %v536, %v72
    %vm553 = vcmp.eq.s32.totalorder %v537, %v72
    %vm554 = vcmp.eq.s32.totalorder %v538, %v72
    %vm555 = vcmp.eq.s32.totalorder %v539, %v72
    %vm556 = vcmp.eq.s32.totalorder %v540, %v72
    %vm557 = vcmp.eq.s32.totalorder %v541, %v72
    %vm558 = vcmp.eq.s32.totalorder %v542, %v72
    %vm559 = vcmp.eq.s32.totalorder %v535, %v176
    %vm560 = vcmp.eq.s32.totalorder %v536, %v176
    %vm561 = vcmp.eq.s32.totalorder %v537, %v176
    %vm562 = vcmp.eq.s32.totalorder %v538, %v176
    %vm563 = vcmp.eq.s32.totalorder %v539, %v176
    %vm564 = vcmp.eq.s32.totalorder %v540, %v176
    %vm565 = vcmp.eq.s32.totalorder %v541, %v176
    %vm566 = vcmp.eq.s32.totalorder %v542, %v176
    %vm567 = vcmp.eq.s32.totalorder %v535, %v177
    %vm568 = vcmp.eq.s32.totalorder %v536, %v177
    %vm569 = vcmp.eq.s32.totalorder %v537, %v177
    %vm570 = vcmp.eq.s32.totalorder %v538, %v177
    %vm571 = vcmp.eq.s32.totalorder %v539, %v177
    %vm572 = vcmp.eq.s32.totalorder %v540, %v177
    %vm573 = vcmp.eq.s32.totalorder %v541, %v177
    %vm574 = vcmp.eq.s32.totalorder %v542, %v177
    %v575 = vsel %vm543, 1.0, 0.0
    %v576 = vsel %vm544, 1.0, 0.0
    %v577 = vsel %vm545, 1.0, 0.0
    %v578 = vsel %vm546, 1.0, 0.0
    %v579 = vsel %vm547, 1.0, 0.0
    %v580 = vsel %vm548, 1.0, 0.0
    %v581 = vsel %vm549, 1.0, 0.0
    %v582 = vsel %vm550, 1.0, 0.0
    %v583 = vsel %vm551, 1.0, 0.0
    %v584 = vsel %vm552, 1.0, 0.0
    %v585 = vsel %vm553, 1.0, 0.0
    %v586 = vsel %vm554, 1.0, 0.0
    %v587 = vsel %vm555, 1.0, 0.0
    %v588 = vsel %vm556, 1.0, 0.0
    %v589 = vsel %vm557, 1.0, 0.0
    %v590 = vsel %vm558, 1.0, 0.0
    %v591 = vsel %vm559, 1.0, 0.0
    %v592 = vsel %vm560, 1.0, 0.0
    %v593 = vsel %vm561, 1.0, 0.0
    %v594 = vsel %vm562, 1.0, 0.0
    %v595 = vsel %vm563, 1.0, 0.0
    %v596 = vsel %vm564, 1.0, 0.0
    %v597 = vsel %vm565, 1.0, 0.0
    %v598 = vsel %vm566, 1.0, 0.0
    %v599 = vsel %vm567, 1.0, 0.0
    %v600 = vsel %vm568, 1.0, 0.0
    %v601 = vsel %vm569, 1.0, 0.0
    %v602 = vsel %vm570, 1.0, 0.0
    %v603 = vsel %vm571, 1.0, 0.0
    %v604 = vsel %vm572, 1.0, 0.0
    %v605 = vsel %vm573, 1.0, 0.0
    %v606 = vsel %vm574, 1.0, 0.0
    %v608 = vsel %vm214, %v507, 0
    %610 = vmatpush.msra.mxu0 0.0
    %611 = vmatpush.msra.mxu0 0.0
    %612 = vmatpush.msra.mxu0 0.0
    %613 = vmatpush.msra.mxu0 0.0
    %614 = vmatpush.msra.mxu0 0.0
    %615 = vmatpush.msra.mxu0 0.0
    %616 = vmatpush.msra.mxu0 0.0
    %617 = vmatpush.msra.mxu0 0.0
    %618 = vmatpush.msra.mxu0 0.0
    %619 = vmatpush.msra.mxu0 0.0
    %620 = vmatpush.msra.mxu0 0.0
    %621 = vmatpush.msra.mxu0 0.0
    %622 = vmatpush.msra.mxu0 %v599
    %623 = vmatpush.msra.mxu0 %v591
    %624 = vmatpush.msra.mxu0 %v583
    %625 = vmatpush.msra.mxu0 %v575
    %626 = vmatmul.f32.gmra.mxu0 %v608
    %v627 = vpop.f32.mrf.mxu0
    %v628 = vadd.f32 0.0, %v627
    %629 = vdwg.mxu0
    %630 = vmatpush.msra.mxu0 0.0
    %631 = vmatpush.msra.mxu0 0.0
    %632 = vmatpush.msra.mxu0 0.0
    %633 = vmatpush.msra.mxu0 0.0
    %634 = vmatpush.msra.mxu0 0.0
    %635 = vmatpush.msra.mxu0 0.0
    %636 = vmatpush.msra.mxu0 0.0
    %637 = vmatpush.msra.mxu0 0.0
    %638 = vmatpush.msra.mxu0 0.0
    %639 = vmatpush.msra.mxu0 0.0
    %640 = vmatpush.msra.mxu0 0.0
    %641 = vmatpush.msra.mxu0 0.0
    %642 = vmatpush.msra.mxu0 %v600
    %643 = vmatpush.msra.mxu0 %v592
    %644 = vmatpush.msra.mxu0 %v584
    %645 = vmatpush.msra.mxu0 %v576
    %646 = vmatmul.f32.gmra.mxu0 %v608
    %v647 = vpop.f32.mrf.mxu0
    %v648 = vadd.f32 0.0, %v647
    %649 = vdwg.mxu0
    %650 = vmatpush.msra.mxu0 0.0
    %651 = vmatpush.msra.mxu0 0.0
    %652 = vmatpush.msra.mxu0 0.0
    %653 = vmatpush.msra.mxu0 0.0
    %654 = vmatpush.msra.mxu0 0.0
    %655 = vmatpush.msra.mxu0 0.0
    %656 = vmatpush.msra.mxu0 0.0
    %657 = vmatpush.msra.mxu0 0.0
    %658 = vmatpush.msra.mxu0 0.0
    %659 = vmatpush.msra.mxu0 0.0
    %660 = vmatpush.msra.mxu0 0.0
    %661 = vmatpush.msra.mxu0 0.0
    %662 = vmatpush.msra.mxu0 %v601
    %663 = vmatpush.msra.mxu0 %v593
    %664 = vmatpush.msra.mxu0 %v585
    %665 = vmatpush.msra.mxu0 %v577
    %666 = vmatmul.f32.gmra.mxu0 %v608
    %v667 = vpop.f32.mrf.mxu0
    %v668 = vadd.f32 0.0, %v667
    %669 = vdwg.mxu0
    %670 = vmatpush.msra.mxu0 0.0
    %671 = vmatpush.msra.mxu0 0.0
    %672 = vmatpush.msra.mxu0 0.0
    %673 = vmatpush.msra.mxu0 0.0
    %674 = vmatpush.msra.mxu0 0.0
    %675 = vmatpush.msra.mxu0 0.0
    %676 = vmatpush.msra.mxu0 0.0
    %677 = vmatpush.msra.mxu0 0.0
    %678 = vmatpush.msra.mxu0 0.0
    %679 = vmatpush.msra.mxu0 0.0
    %680 = vmatpush.msra.mxu0 0.0
    %681 = vmatpush.msra.mxu0 0.0
    %682 = vmatpush.msra.mxu0 %v602
    %683 = vmatpush.msra.mxu0 %v594
    %684 = vmatpush.msra.mxu0 %v586
    %685 = vmatpush.msra.mxu0 %v578
    %686 = vmatmul.f32.gmra.mxu0 %v608
    %v687 = vpop.f32.mrf.mxu0
    %v688 = vadd.f32 0.0, %v687
    %689 = vdwg.mxu0
    %690 = vmatpush.msra.mxu0 0.0
    %691 = vmatpush.msra.mxu0 0.0
    %692 = vmatpush.msra.mxu0 0.0
    %693 = vmatpush.msra.mxu0 0.0
    %694 = vmatpush.msra.mxu0 0.0
    %695 = vmatpush.msra.mxu0 0.0
    %696 = vmatpush.msra.mxu0 0.0
    %697 = vmatpush.msra.mxu0 0.0
    %698 = vmatpush.msra.mxu0 0.0
    %699 = vmatpush.msra.mxu0 0.0
    %700 = vmatpush.msra.mxu0 0.0
    %701 = vmatpush.msra.mxu0 0.0
    %702 = vmatpush.msra.mxu0 %v603
    %703 = vmatpush.msra.mxu0 %v595
    %704 = vmatpush.msra.mxu0 %v587
    %705 = vmatpush.msra.mxu0 %v579
    %706 = vmatmul.f32.gmra.mxu0 %v608
    %v707 = vpop.f32.mrf.mxu0
    %v708 = vadd.f32 0.0, %v707
    %709 = vdwg.mxu0
    %710 = vmatpush.msra.mxu0 0.0
    %711 = vmatpush.msra.mxu0 0.0
    %712 = vmatpush.msra.mxu0 0.0
    %713 = vmatpush.msra.mxu0 0.0
    %714 = vmatpush.msra.mxu0 0.0
    %715 = vmatpush.msra.mxu0 0.0
    %716 = vmatpush.msra.mxu0 0.0
    %717 = vmatpush.msra.mxu0 0.0
    %718 = vmatpush.msra.mxu0 0.0
    %719 = vmatpush.msra.mxu0 0.0
    %720 = vmatpush.msra.mxu0 0.0
    %721 = vmatpush.msra.mxu0 0.0
    %722 = vmatpush.msra.mxu0 %v604
    %723 = vmatpush.msra.mxu0 %v596
    %724 = vmatpush.msra.mxu0 %v588
    %725 = vmatpush.msra.mxu0 %v580
    %726 = vmatmul.f32.gmra.mxu0 %v608
    %v727 = vpop.f32.mrf.mxu0
    %v728 = vadd.f32 0.0, %v727
    %729 = vdwg.mxu0
    %730 = vmatpush.msra.mxu0 0.0
    %731 = vmatpush.msra.mxu0 0.0
    %732 = vmatpush.msra.mxu0 0.0
    %733 = vmatpush.msra.mxu0 0.0
    %734 = vmatpush.msra.mxu0 0.0
    %735 = vmatpush.msra.mxu0 0.0
    %736 = vmatpush.msra.mxu0 0.0
    %737 = vmatpush.msra.mxu0 0.0
    %738 = vmatpush.msra.mxu0 0.0
    %739 = vmatpush.msra.mxu0 0.0
    %740 = vmatpush.msra.mxu0 0.0
    %741 = vmatpush.msra.mxu0 0.0
    %742 = vmatpush.msra.mxu0 %v605
    %743 = vmatpush.msra.mxu0 %v597
    %744 = vmatpush.msra.mxu0 %v589
    %745 = vmatpush.msra.mxu0 %v581
    %746 = vmatmul.f32.gmra.mxu0 %v608
    %v747 = vpop.f32.mrf.mxu0
    %v748 = vadd.f32 0.0, %v747
    %749 = vdwg.mxu0
    %750 = vmatpush.msra.mxu0 0.0
    %751 = vmatpush.msra.mxu0 0.0
    %752 = vmatpush.msra.mxu0 0.0
    %753 = vmatpush.msra.mxu0 0.0
    %754 = vmatpush.msra.mxu0 0.0
    %755 = vmatpush.msra.mxu0 0.0
    %756 = vmatpush.msra.mxu0 0.0
    %757 = vmatpush.msra.mxu0 0.0
    %758 = vmatpush.msra.mxu0 0.0
    %759 = vmatpush.msra.mxu0 0.0
    %760 = vmatpush.msra.mxu0 0.0
    %761 = vmatpush.msra.mxu0 0.0
    %762 = vmatpush.msra.mxu0 %v606
    %763 = vmatpush.msra.mxu0 %v598
    %764 = vmatpush.msra.mxu0 %v590
    %765 = vmatpush.msra.mxu0 %v582
    %766 = vmatmul.f32.gmra.mxu0 %v608
    %v767 = vpop.f32.mrf.mxu0
    %v768 = vadd.f32 0.0, %v767
    %769 = vdwg.mxu0
    %v770 = vshra.s32 %v66, 5
    %v771 = vshra.s32 %v67, 5
    %v772 = vshra.s32 %v68, 5
    %v773 = vshra.s32 %v69, 5
    %v774 = vshra.s32 %v531, 5
    %v775 = vshra.s32 %v532, 5
    %v776 = vshra.s32 %v533, 5
    %v777 = vshra.s32 %v534, 5
    %vm778 = vcmp.eq.s32.totalorder %v770, %v71
    %vm779 = vcmp.eq.s32.totalorder %v771, %v71
    %vm780 = vcmp.eq.s32.totalorder %v772, %v71
    %vm781 = vcmp.eq.s32.totalorder %v773, %v71
    %vm782 = vcmp.eq.s32.totalorder %v774, %v71
    %vm783 = vcmp.eq.s32.totalorder %v775, %v71
    %vm784 = vcmp.eq.s32.totalorder %v776, %v71
    %vm785 = vcmp.eq.s32.totalorder %v777, %v71
    %vm786 = vcmp.eq.s32.totalorder %v770, %v72
    %vm787 = vcmp.eq.s32.totalorder %v771, %v72
    %vm788 = vcmp.eq.s32.totalorder %v772, %v72
    %vm789 = vcmp.eq.s32.totalorder %v773, %v72
    %vm790 = vcmp.eq.s32.totalorder %v774, %v72
    %vm791 = vcmp.eq.s32.totalorder %v775, %v72
    %vm792 = vcmp.eq.s32.totalorder %v776, %v72
    %vm793 = vcmp.eq.s32.totalorder %v777, %v72
    %vm794 = vcmp.eq.s32.totalorder %v770, %v176
    %vm795 = vcmp.eq.s32.totalorder %v771, %v176
    %vm796 = vcmp.eq.s32.totalorder %v772, %v176
    %vm797 = vcmp.eq.s32.totalorder %v773, %v176
    %vm798 = vcmp.eq.s32.totalorder %v774, %v176
    %vm799 = vcmp.eq.s32.totalorder %v775, %v176
    %vm800 = vcmp.eq.s32.totalorder %v776, %v176
    %vm801 = vcmp.eq.s32.totalorder %v777, %v176
    %vm802 = vcmp.eq.s32.totalorder %v770, %v177
    %vm803 = vcmp.eq.s32.totalorder %v771, %v177
    %vm804 = vcmp.eq.s32.totalorder %v772, %v177
    %vm805 = vcmp.eq.s32.totalorder %v773, %v177
    %vm806 = vcmp.eq.s32.totalorder %v774, %v177
    %vm807 = vcmp.eq.s32.totalorder %v775, %v177
    %vm808 = vcmp.eq.s32.totalorder %v776, %v177
    %vm809 = vcmp.eq.s32.totalorder %v777, %v177
    %v810 = vsel %vm778, 1.0, 0.0
    %v811 = vsel %vm779, 1.0, 0.0
    %v812 = vsel %vm780, 1.0, 0.0
    %v813 = vsel %vm781, 1.0, 0.0
    %v814 = vsel %vm782, 1.0, 0.0
    %v815 = vsel %vm783, 1.0, 0.0
    %v816 = vsel %vm784, 1.0, 0.0
    %v817 = vsel %vm785, 1.0, 0.0
    %v818 = vsel %vm786, 1.0, 0.0
    %v819 = vsel %vm787, 1.0, 0.0
    %v820 = vsel %vm788, 1.0, 0.0
    %v821 = vsel %vm789, 1.0, 0.0
    %v822 = vsel %vm790, 1.0, 0.0
    %v823 = vsel %vm791, 1.0, 0.0
    %v824 = vsel %vm792, 1.0, 0.0
    %v825 = vsel %vm793, 1.0, 0.0
    %v826 = vsel %vm794, 1.0, 0.0
    %v827 = vsel %vm795, 1.0, 0.0
    %v828 = vsel %vm796, 1.0, 0.0
    %v829 = vsel %vm797, 1.0, 0.0
    %v830 = vsel %vm798, 1.0, 0.0
    %v831 = vsel %vm799, 1.0, 0.0
    %v832 = vsel %vm800, 1.0, 0.0
    %v833 = vsel %vm801, 1.0, 0.0
    %v834 = vsel %vm802, 1.0, 0.0
    %v835 = vsel %vm803, 1.0, 0.0
    %v836 = vsel %vm804, 1.0, 0.0
    %v837 = vsel %vm805, 1.0, 0.0
    %v838 = vsel %vm806, 1.0, 0.0
    %v839 = vsel %vm807, 1.0, 0.0
    %v840 = vsel %vm808, 1.0, 0.0
    %v841 = vsel %vm809, 1.0, 0.0
    %v843 = vsel %vm214, %v530, 0
    %845 = vmatpush.msra.mxu0 0.0
    %846 = vmatpush.msra.mxu0 0.0
    %847 = vmatpush.msra.mxu0 0.0
    %848 = vmatpush.msra.mxu0 0.0
    %849 = vmatpush.msra.mxu0 0.0
    %850 = vmatpush.msra.mxu0 0.0
    %851 = vmatpush.msra.mxu0 0.0
    %852 = vmatpush.msra.mxu0 0.0
    %853 = vmatpush.msra.mxu0 0.0
    %854 = vmatpush.msra.mxu0 0.0
    %855 = vmatpush.msra.mxu0 0.0
    %856 = vmatpush.msra.mxu0 0.0
    %857 = vmatpush.msra.mxu0 %v834
    %858 = vmatpush.msra.mxu0 %v826
    %859 = vmatpush.msra.mxu0 %v818
    %860 = vmatpush.msra.mxu0 %v810
    %861 = vmatmul.f32.gmra.mxu0 %v843
    %v862 = vpop.f32.mrf.mxu0
    %v863 = vadd.f32 0.0, %v862
    %864 = vdwg.mxu0
    %865 = vmatpush.msra.mxu0 0.0
    %866 = vmatpush.msra.mxu0 0.0
    %867 = vmatpush.msra.mxu0 0.0
    %868 = vmatpush.msra.mxu0 0.0
    %869 = vmatpush.msra.mxu0 0.0
    %870 = vmatpush.msra.mxu0 0.0
    %871 = vmatpush.msra.mxu0 0.0
    %872 = vmatpush.msra.mxu0 0.0
    %873 = vmatpush.msra.mxu0 0.0
    %874 = vmatpush.msra.mxu0 0.0
    %875 = vmatpush.msra.mxu0 0.0
    %876 = vmatpush.msra.mxu0 0.0
    %877 = vmatpush.msra.mxu0 %v835
    %878 = vmatpush.msra.mxu0 %v827
    %879 = vmatpush.msra.mxu0 %v819
    %880 = vmatpush.msra.mxu0 %v811
    %881 = vmatmul.f32.gmra.mxu0 %v843
    %v882 = vpop.f32.mrf.mxu0
    %v883 = vadd.f32 0.0, %v882
    %884 = vdwg.mxu0
    %885 = vmatpush.msra.mxu0 0.0
    %886 = vmatpush.msra.mxu0 0.0
    %887 = vmatpush.msra.mxu0 0.0
    %888 = vmatpush.msra.mxu0 0.0
    %889 = vmatpush.msra.mxu0 0.0
    %890 = vmatpush.msra.mxu0 0.0
    %891 = vmatpush.msra.mxu0 0.0
    %892 = vmatpush.msra.mxu0 0.0
    %893 = vmatpush.msra.mxu0 0.0
    %894 = vmatpush.msra.mxu0 0.0
    %895 = vmatpush.msra.mxu0 0.0
    %896 = vmatpush.msra.mxu0 0.0
    %897 = vmatpush.msra.mxu0 %v836
    %898 = vmatpush.msra.mxu0 %v828
    %899 = vmatpush.msra.mxu0 %v820
    %900 = vmatpush.msra.mxu0 %v812
    %901 = vmatmul.f32.gmra.mxu0 %v843
    %v902 = vpop.f32.mrf.mxu0
    %v903 = vadd.f32 0.0, %v902
    %904 = vdwg.mxu0
    %905 = vmatpush.msra.mxu0 0.0
    %906 = vmatpush.msra.mxu0 0.0
    %907 = vmatpush.msra.mxu0 0.0
    %908 = vmatpush.msra.mxu0 0.0
    %909 = vmatpush.msra.mxu0 0.0
    %910 = vmatpush.msra.mxu0 0.0
    %911 = vmatpush.msra.mxu0 0.0
    %912 = vmatpush.msra.mxu0 0.0
    %913 = vmatpush.msra.mxu0 0.0
    %914 = vmatpush.msra.mxu0 0.0
    %915 = vmatpush.msra.mxu0 0.0
    %916 = vmatpush.msra.mxu0 0.0
    %917 = vmatpush.msra.mxu0 %v837
    %918 = vmatpush.msra.mxu0 %v829
    %919 = vmatpush.msra.mxu0 %v821
    %920 = vmatpush.msra.mxu0 %v813
    %921 = vmatmul.f32.gmra.mxu0 %v843
    %v922 = vpop.f32.mrf.mxu0
    %v923 = vadd.f32 0.0, %v922
    %924 = vdwg.mxu0
    %925 = vmatpush.msra.mxu0 0.0
    %926 = vmatpush.msra.mxu0 0.0
    %927 = vmatpush.msra.mxu0 0.0
    %928 = vmatpush.msra.mxu0 0.0
    %929 = vmatpush.msra.mxu0 0.0
    %930 = vmatpush.msra.mxu0 0.0
    %931 = vmatpush.msra.mxu0 0.0
    %932 = vmatpush.msra.mxu0 0.0
    %933 = vmatpush.msra.mxu0 0.0
    %934 = vmatpush.msra.mxu0 0.0
    %935 = vmatpush.msra.mxu0 0.0
    %936 = vmatpush.msra.mxu0 0.0
    %937 = vmatpush.msra.mxu0 %v838
    %938 = vmatpush.msra.mxu0 %v830
    %939 = vmatpush.msra.mxu0 %v822
    %940 = vmatpush.msra.mxu0 %v814
    %941 = vmatmul.f32.gmra.mxu0 %v843
    %v942 = vpop.f32.mrf.mxu0
    %v943 = vadd.f32 0.0, %v942
    %944 = vdwg.mxu0
    %945 = vmatpush.msra.mxu0 0.0
    %946 = vmatpush.msra.mxu0 0.0
    %947 = vmatpush.msra.mxu0 0.0
    %948 = vmatpush.msra.mxu0 0.0
    %949 = vmatpush.msra.mxu0 0.0
    %950 = vmatpush.msra.mxu0 0.0
    %951 = vmatpush.msra.mxu0 0.0
    %952 = vmatpush.msra.mxu0 0.0
    %953 = vmatpush.msra.mxu0 0.0
    %954 = vmatpush.msra.mxu0 0.0
    %955 = vmatpush.msra.mxu0 0.0
    %956 = vmatpush.msra.mxu0 0.0
    %957 = vmatpush.msra.mxu0 %v839
    %958 = vmatpush.msra.mxu0 %v831
    %959 = vmatpush.msra.mxu0 %v823
    %960 = vmatpush.msra.mxu0 %v815
    %961 = vmatmul.f32.gmra.mxu0 %v843
    %v962 = vpop.f32.mrf.mxu0
    %v963 = vadd.f32 0.0, %v962
    %964 = vdwg.mxu0
    %965 = vmatpush.msra.mxu0 0.0
    %966 = vmatpush.msra.mxu0 0.0
    %967 = vmatpush.msra.mxu0 0.0
    %968 = vmatpush.msra.mxu0 0.0
    %969 = vmatpush.msra.mxu0 0.0
    %970 = vmatpush.msra.mxu0 0.0
    %971 = vmatpush.msra.mxu0 0.0
    %972 = vmatpush.msra.mxu0 0.0
    %973 = vmatpush.msra.mxu0 0.0
    %974 = vmatpush.msra.mxu0 0.0
    %975 = vmatpush.msra.mxu0 0.0
    %976 = vmatpush.msra.mxu0 0.0
    %977 = vmatpush.msra.mxu0 %v840
    %978 = vmatpush.msra.mxu0 %v832
    %979 = vmatpush.msra.mxu0 %v824
    %980 = vmatpush.msra.mxu0 %v816
    %981 = vmatmul.f32.gmra.mxu0 %v843
    %v982 = vpop.f32.mrf.mxu0
    %v983 = vadd.f32 0.0, %v982
    %984 = vdwg.mxu0
    %985 = vmatpush.msra.mxu0 0.0
    %986 = vmatpush.msra.mxu0 0.0
    %987 = vmatpush.msra.mxu0 0.0
    %988 = vmatpush.msra.mxu0 0.0
    %989 = vmatpush.msra.mxu0 0.0
    %990 = vmatpush.msra.mxu0 0.0
    %991 = vmatpush.msra.mxu0 0.0
    %992 = vmatpush.msra.mxu0 0.0
    %993 = vmatpush.msra.mxu0 0.0
    %994 = vmatpush.msra.mxu0 0.0
    %995 = vmatpush.msra.mxu0 0.0
    %996 = vmatpush.msra.mxu0 0.0
    %997 = vmatpush.msra.mxu0 %v841
    %998 = vmatpush.msra.mxu0 %v833
    %999 = vmatpush.msra.mxu0 %v825
    %1000 = vmatpush.msra.mxu0 %v817
    %1001 = vmatmul.f32.gmra.mxu0 %v843
    %v1002 = vpop.f32.mrf.mxu0
    %v1003 = vadd.f32 0.0, %v1002
    %1004 = vdwg.mxu0
    %v1005 = vmul.f32 %v628, %v863
    %v1006 = vmul.f32 %v648, %v883
    %v1007 = vmul.f32 %v668, %v903
    %v1008 = vmul.f32 %v688, %v923
    %v1009 = vmul.f32 %v708, %v943
    %v1010 = vmul.f32 %v728, %v963
    %v1011 = vmul.f32 %v748, %v983
    %v1012 = vmul.f32 %v768, %v1003
    %v1013 = vld [vmem:[%s7] sm:$0xff]
    %v1014 = vld [vmem:[%s7 + $0x8] sm:$0xff]
    %v1015 = vld [vmem:[%s7 + $0x10] sm:$0xff]
    %v1016 = vld [vmem:[%s7 + $0x18] sm:$0xff]
    %v1017 = vld [vmem:[%s7 + $0x20] sm:$0xff]
    %v1018 = vld [vmem:[%s7 + $0x28] sm:$0xff]
    %v1019 = vld [vmem:[%s7 + $0x30] sm:$0xff]
    %v1020 = vld [vmem:[%s7 + $0x38] sm:$0xff]
    %v1021 = vld [vmem:[%s7 + $0x40] sm:$0xff]
    %v1022 = vld [vmem:[%s7 + $0x48] sm:$0xff]
    %v1023 = vld [vmem:[%s7 + $0x50] sm:$0xff]
    %v1024 = vld [vmem:[%s7 + $0x58] sm:$0xff]
    %v1025 = vld [vmem:[%s7 + $0x60] sm:$0xff]
    %v1026 = vld [vmem:[%s7 + $0x68] sm:$0xff]
    %v1027 = vld [vmem:[%s7 + $0x70] sm:$0xff]
    %v1028 = vld [vmem:[%s7 + $0x78] sm:$0xff]
    %v1029 = vld [vmem:[%s7 + $0x80] sm:$0xff]
    %v1030 = vld [vmem:[%s7 + $0x88] sm:$0xff]
    %v1031 = vld [vmem:[%s7 + $0x90] sm:$0xff]
    %v1032 = vld [vmem:[%s7 + $0x98] sm:$0xff]
    %v1033 = vld [vmem:[%s7 + $0xa0] sm:$0xff]
    %v1034 = vld [vmem:[%s7 + $0xa8] sm:$0xff]
    %v1035 = vld [vmem:[%s7 + $0xb0] sm:$0xff]
    %v1036 = vld [vmem:[%s7 + $0xb8] sm:$0xff]
    %v1037 = vld [vmem:[%s7 + $0xc0] sm:$0xff]
    %v1038 = vld [vmem:[%s7 + $0xc8] sm:$0xff]
    %v1039 = vld [vmem:[%s7 + $0xd0] sm:$0xff]
    %v1040 = vld [vmem:[%s7 + $0xd8] sm:$0xff]
    %v1041 = vld [vmem:[%s7 + $0xe0] sm:$0xff]
    %v1042 = vld [vmem:[%s7 + $0xe8] sm:$0xff]
    %v1043 = vld [vmem:[%s7 + $0xf0] sm:$0xff]
    %v1044 = vld [vmem:[%s7 + $0xf8] sm:$0xff]
    %v1045 = vld [vmem:[%s7 + $0x100] sm:$0xff]
    %v1046 = vld [vmem:[%s7 + $0x108] sm:$0xff]
    %v1047 = vld [vmem:[%s7 + $0x110] sm:$0xff]
    %v1048 = vld [vmem:[%s7 + $0x118] sm:$0xff]
    %v1049 = vld [vmem:[%s7 + $0x120] sm:$0xff]
    %v1050 = vld [vmem:[%s7 + $0x128] sm:$0xff]
    %v1051 = vld [vmem:[%s7 + $0x130] sm:$0xff]
    %v1052 = vld [vmem:[%s7 + $0x138] sm:$0xff]
    %v1053 = vld [vmem:[%s7 + $0x140] sm:$0xff]
    %v1054 = vld [vmem:[%s7 + $0x148] sm:$0xff]
    %v1055 = vld [vmem:[%s7 + $0x150] sm:$0xff]
    %v1056 = vld [vmem:[%s7 + $0x158] sm:$0xff]
    %v1057 = vld [vmem:[%s7 + $0x160] sm:$0xff]
    %v1058 = vld [vmem:[%s7 + $0x168] sm:$0xff]
    %v1059 = vld [vmem:[%s7 + $0x170] sm:$0xff]
    %v1060 = vld [vmem:[%s7 + $0x178] sm:$0xff]
    %v1061 = vld [vmem:[%s7 + $0x180] sm:$0xff]
    %v1062 = vld [vmem:[%s7 + $0x188] sm:$0xff]
    %v1063 = vld [vmem:[%s7 + $0x190] sm:$0xff]
    %v1064 = vld [vmem:[%s7 + $0x198] sm:$0xff]
    %v1065 = vld [vmem:[%s7 + $0x1a0] sm:$0xff]
    %v1066 = vld [vmem:[%s7 + $0x1a8] sm:$0xff]
    %v1067 = vld [vmem:[%s7 + $0x1b0] sm:$0xff]
    %v1068 = vld [vmem:[%s7 + $0x1b8] sm:$0xff]
    %v1069 = vld [vmem:[%s7 + $0x1c0] sm:$0xff]
    %v1070 = vld [vmem:[%s7 + $0x1c8] sm:$0xff]
    %v1071 = vld [vmem:[%s7 + $0x1d0] sm:$0xff]
    %v1072 = vld [vmem:[%s7 + $0x1d8] sm:$0xff]
    %v1073 = vld [vmem:[%s7 + $0x1e0] sm:$0xff]
    %v1074 = vld [vmem:[%s7 + $0x1e8] sm:$0xff]
    %v1075 = vld [vmem:[%s7 + $0x1f0] sm:$0xff]
    %v1076 = vld [vmem:[%s7 + $0x1f8] sm:$0xff]
    %v1077 = vld [vmem:[%s7 + $0x200] sm:$0xff]
    %v1078 = vld [vmem:[%s7 + $0x208] sm:$0xff]
    %v1079 = vld [vmem:[%s7 + $0x210] sm:$0xff]
    %v1080 = vld [vmem:[%s7 + $0x218] sm:$0xff]
    %v1081 = vld [vmem:[%s7 + $0x220] sm:$0xff]
    %v1082 = vld [vmem:[%s7 + $0x228] sm:$0xff]
    %v1083 = vld [vmem:[%s7 + $0x230] sm:$0xff]
    %v1084 = vld [vmem:[%s7 + $0x238] sm:$0xff]
    %v1085 = vld [vmem:[%s7 + $0x240] sm:$0xff]
    %v1086 = vld [vmem:[%s7 + $0x248] sm:$0xff]
    %v1087 = vld [vmem:[%s7 + $0x250] sm:$0xff]
    %v1088 = vld [vmem:[%s7 + $0x258] sm:$0xff]
    %v1089 = vld [vmem:[%s7 + $0x260] sm:$0xff]
    %v1090 = vld [vmem:[%s7 + $0x268] sm:$0xff]
    %v1091 = vld [vmem:[%s7 + $0x270] sm:$0xff]
    %v1092 = vld [vmem:[%s7 + $0x278] sm:$0xff]
    %v1093 = vld [vmem:[%s7 + $0x280] sm:$0xff]
    %v1094 = vld [vmem:[%s7 + $0x288] sm:$0xff]
    %v1095 = vld [vmem:[%s7 + $0x290] sm:$0xff]
    %v1096 = vld [vmem:[%s7 + $0x298] sm:$0xff]
    %v1097 = vld [vmem:[%s7 + $0x2a0] sm:$0xff]
    %v1098 = vld [vmem:[%s7 + $0x2a8] sm:$0xff]
    %v1099 = vld [vmem:[%s7 + $0x2b0] sm:$0xff]
    %v1100 = vld [vmem:[%s7 + $0x2b8] sm:$0xff]
    %v1101 = vld [vmem:[%s7 + $0x2c0] sm:$0xff]
    %v1102 = vld [vmem:[%s7 + $0x2c8] sm:$0xff]
    %v1103 = vld [vmem:[%s7 + $0x2d0] sm:$0xff]
    %v1104 = vld [vmem:[%s7 + $0x2d8] sm:$0xff]
    %v1105 = vld [vmem:[%s7 + $0x2e0] sm:$0xff]
    %v1106 = vld [vmem:[%s7 + $0x2e8] sm:$0xff]
    %v1107 = vld [vmem:[%s7 + $0x2f0] sm:$0xff]
    %v1108 = vld [vmem:[%s7 + $0x2f8] sm:$0xff]
    %v1109 = vld [vmem:[%s7 + $0x300] sm:$0xff]
    %v1110 = vld [vmem:[%s7 + $0x308] sm:$0xff]
    %v1111 = vld [vmem:[%s7 + $0x310] sm:$0xff]
    %v1112 = vld [vmem:[%s7 + $0x318] sm:$0xff]
    %v1113 = vld [vmem:[%s7 + $0x320] sm:$0xff]
    %v1114 = vld [vmem:[%s7 + $0x328] sm:$0xff]
    %v1115 = vld [vmem:[%s7 + $0x330] sm:$0xff]
    %v1116 = vld [vmem:[%s7 + $0x338] sm:$0xff]
    %v1117 = vld [vmem:[%s7 + $0x340] sm:$0xff]
    %v1118 = vld [vmem:[%s7 + $0x348] sm:$0xff]
    %v1119 = vld [vmem:[%s7 + $0x350] sm:$0xff]
    %v1120 = vld [vmem:[%s7 + $0x358] sm:$0xff]
    %v1121 = vld [vmem:[%s7 + $0x360] sm:$0xff]
    %v1122 = vld [vmem:[%s7 + $0x368] sm:$0xff]
    %v1123 = vld [vmem:[%s7 + $0x370] sm:$0xff]
    %v1124 = vld [vmem:[%s7 + $0x378] sm:$0xff]
    %v1125 = vld [vmem:[%s7 + $0x380] sm:$0xff]
    %v1126 = vld [vmem:[%s7 + $0x388] sm:$0xff]
    %v1127 = vld [vmem:[%s7 + $0x390] sm:$0xff]
    %v1128 = vld [vmem:[%s7 + $0x398] sm:$0xff]
    %v1129 = vld [vmem:[%s7 + $0x3a0] sm:$0xff]
    %v1130 = vld [vmem:[%s7 + $0x3a8] sm:$0xff]
    %v1131 = vld [vmem:[%s7 + $0x3b0] sm:$0xff]
    %v1132 = vld [vmem:[%s7 + $0x3b8] sm:$0xff]
    %v1133 = vld [vmem:[%s7 + $0x3c0] sm:$0xff]
    %v1134 = vld [vmem:[%s7 + $0x3c8] sm:$0xff]
    %v1135 = vld [vmem:[%s7 + $0x3d0] sm:$0xff]
    %v1136 = vld [vmem:[%s7 + $0x3d8] sm:$0xff]
    %v1137 = vld [vmem:[%s7 + $0x3e0] sm:$0xff]
    %v1138 = vld [vmem:[%s7 + $0x3e8] sm:$0xff]
    %v1139 = vld [vmem:[%s7 + $0x3f0] sm:$0xff]
    %v1140 = vld [vmem:[%s7 + $0x3f8] sm:$0xff]
    %v1141 = vld [vmem:[%s8] sm:$0xff]
    %v1142 = vld [vmem:[%s8 + $0x8] sm:$0xff]
    %v1143 = vld [vmem:[%s8 + $0x10] sm:$0xff]
    %v1144 = vld [vmem:[%s8 + $0x18] sm:$0xff]
    %v1145 = vld [vmem:[%s8 + $0x20] sm:$0xff]
    %v1146 = vsel %vm371, %v507, 0
    %1148 = vmatpush.msra.mxu0 0.0
    %1149 = vmatpush.msra.mxu0 0.0
    %1150 = vmatpush.msra.mxu0 0.0
    %1151 = vmatpush.msra.mxu0 0.0
    %1152 = vmatpush.msra.mxu0 0.0
    %1153 = vmatpush.msra.mxu0 0.0
    %1154 = vmatpush.msra.mxu0 0.0
    %1155 = vmatpush.msra.mxu0 0.0
    %1156 = vmatpush.msra.mxu0 0.0
    %1157 = vmatpush.msra.mxu0 0.0
    %1158 = vmatpush.msra.mxu0 0.0
    %1159 = vmatpush.msra.mxu0 %v1145
    %1160 = vmatpush.msra.mxu0 %v1144
    %1161 = vmatpush.msra.mxu0 %v1143
    %1162 = vmatpush.msra.mxu0 %v1142
    %1163 = vmatpush.msra.mxu0 %v1141
    %1164 = vmatmul.f32.gmra.mxu0 %v1146
    %v1165 = vpop.f32.mrf.mxu0
    %v1166 = vadd.f32 0.0, %v1165
    %1167 = vdwg.mxu0
    %1168 = vmatpush.msra.mxu0 %v1028
    %1169 = vmatpush.msra.mxu0 %v1027
    %1170 = vmatpush.msra.mxu0 %v1026
    %1171 = vmatpush.msra.mxu0 %v1025
    %1172 = vmatpush.msra.mxu0 %v1024
    %1173 = vmatpush.msra.mxu0 %v1023
    %1174 = vmatpush.msra.mxu0 %v1022
    %1175 = vmatpush.msra.mxu0 %v1021
    %1176 = vmatpush.msra.mxu0 %v1020
    %1177 = vmatpush.msra.mxu0 %v1019
    %1178 = vmatpush.msra.mxu0 %v1018
    %1179 = vmatpush.msra.mxu0 %v1017
    %1180 = vmatpush.msra.mxu0 %v1016
    %1181 = vmatpush.msra.mxu0 %v1015
    %1182 = vmatpush.msra.mxu0 %v1014
    %1183 = vmatpush.msra.mxu0 %v1013
    %1184 = vmatmul.f32.gmra.mxu0 %v1005
    %v1185 = vpop.f32.mrf.mxu0
    %v1186 = vadd.f32 %v1166, %v1185
    %1187 = vdwg.mxu0
    %1188 = vmatpush.msra.mxu0 %v1044
    %1189 = vmatpush.msra.mxu0 %v1043
    %1190 = vmatpush.msra.mxu0 %v1042
    %1191 = vmatpush.msra.mxu0 %v1041
    %1192 = vmatpush.msra.mxu0 %v1040
    %1193 = vmatpush.msra.mxu0 %v1039
    %1194 = vmatpush.msra.mxu0 %v1038
    %1195 = vmatpush.msra.mxu0 %v1037
    %1196 = vmatpush.msra.mxu0 %v1036
    %1197 = vmatpush.msra.mxu0 %v1035
    %1198 = vmatpush.msra.mxu0 %v1034
    %1199 = vmatpush.msra.mxu0 %v1033
    %1200 = vmatpush.msra.mxu0 %v1032
    %1201 = vmatpush.msra.mxu0 %v1031
    %1202 = vmatpush.msra.mxu0 %v1030
    %1203 = vmatpush.msra.mxu0 %v1029
    %1204 = vmatmul.f32.gmra.mxu0 %v1006
    %v1205 = vpop.f32.mrf.mxu0
    %v1206 = vadd.f32 %v1186, %v1205
    %1207 = vdwg.mxu0
    %1208 = vmatpush.msra.mxu0 %v1060
    %1209 = vmatpush.msra.mxu0 %v1059
    %1210 = vmatpush.msra.mxu0 %v1058
    %1211 = vmatpush.msra.mxu0 %v1057
    %1212 = vmatpush.msra.mxu0 %v1056
    %1213 = vmatpush.msra.mxu0 %v1055
    %1214 = vmatpush.msra.mxu0 %v1054
    %1215 = vmatpush.msra.mxu0 %v1053
    %1216 = vmatpush.msra.mxu0 %v1052
    %1217 = vmatpush.msra.mxu0 %v1051
    %1218 = vmatpush.msra.mxu0 %v1050
    %1219 = vmatpush.msra.mxu0 %v1049
    %1220 = vmatpush.msra.mxu0 %v1048
    %1221 = vmatpush.msra.mxu0 %v1047
    %1222 = vmatpush.msra.mxu0 %v1046
    %1223 = vmatpush.msra.mxu0 %v1045
    %1224 = vmatmul.f32.gmra.mxu0 %v1007
    %v1225 = vpop.f32.mrf.mxu0
    %v1226 = vadd.f32 %v1206, %v1225
    %1227 = vdwg.mxu0
    %1228 = vmatpush.msra.mxu0 %v1076
    %1229 = vmatpush.msra.mxu0 %v1075
    %1230 = vmatpush.msra.mxu0 %v1074
    %1231 = vmatpush.msra.mxu0 %v1073
    %1232 = vmatpush.msra.mxu0 %v1072
    %1233 = vmatpush.msra.mxu0 %v1071
    %1234 = vmatpush.msra.mxu0 %v1070
    %1235 = vmatpush.msra.mxu0 %v1069
    %1236 = vmatpush.msra.mxu0 %v1068
    %1237 = vmatpush.msra.mxu0 %v1067
    %1238 = vmatpush.msra.mxu0 %v1066
    %1239 = vmatpush.msra.mxu0 %v1065
    %1240 = vmatpush.msra.mxu0 %v1064
    %1241 = vmatpush.msra.mxu0 %v1063
    %1242 = vmatpush.msra.mxu0 %v1062
    %1243 = vmatpush.msra.mxu0 %v1061
    %1244 = vmatmul.f32.gmra.mxu0 %v1008
    %v1245 = vpop.f32.mrf.mxu0
    %v1246 = vadd.f32 %v1226, %v1245
    %1247 = vdwg.mxu0
    %1248 = vmatpush.msra.mxu0 %v1092
    %1249 = vmatpush.msra.mxu0 %v1091
    %1250 = vmatpush.msra.mxu0 %v1090
    %1251 = vmatpush.msra.mxu0 %v1089
    %1252 = vmatpush.msra.mxu0 %v1088
    %1253 = vmatpush.msra.mxu0 %v1087
    %1254 = vmatpush.msra.mxu0 %v1086
    %1255 = vmatpush.msra.mxu0 %v1085
    %1256 = vmatpush.msra.mxu0 %v1084
    %1257 = vmatpush.msra.mxu0 %v1083
    %1258 = vmatpush.msra.mxu0 %v1082
    %1259 = vmatpush.msra.mxu0 %v1081
    %1260 = vmatpush.msra.mxu0 %v1080
    %1261 = vmatpush.msra.mxu0 %v1079
    %1262 = vmatpush.msra.mxu0 %v1078
    %1263 = vmatpush.msra.mxu0 %v1077
    %1264 = vmatmul.f32.gmra.mxu0 %v1009
    %v1265 = vpop.f32.mrf.mxu0
    %v1266 = vadd.f32 %v1246, %v1265
    %1267 = vdwg.mxu0
    %1268 = vmatpush.msra.mxu0 %v1108
    %1269 = vmatpush.msra.mxu0 %v1107
    %1270 = vmatpush.msra.mxu0 %v1106
    %1271 = vmatpush.msra.mxu0 %v1105
    %1272 = vmatpush.msra.mxu0 %v1104
    %1273 = vmatpush.msra.mxu0 %v1103
    %1274 = vmatpush.msra.mxu0 %v1102
    %1275 = vmatpush.msra.mxu0 %v1101
    %1276 = vmatpush.msra.mxu0 %v1100
    %1277 = vmatpush.msra.mxu0 %v1099
    %1278 = vmatpush.msra.mxu0 %v1098
    %1279 = vmatpush.msra.mxu0 %v1097
    %1280 = vmatpush.msra.mxu0 %v1096
    %1281 = vmatpush.msra.mxu0 %v1095
    %1282 = vmatpush.msra.mxu0 %v1094
    %1283 = vmatpush.msra.mxu0 %v1093
    %1284 = vmatmul.f32.gmra.mxu0 %v1010
    %v1285 = vpop.f32.mrf.mxu0
    %v1286 = vadd.f32 %v1266, %v1285
    %1287 = vdwg.mxu0
    %1288 = vmatpush.msra.mxu0 %v1124
    %1289 = vmatpush.msra.mxu0 %v1123
    %1290 = vmatpush.msra.mxu0 %v1122
    %1291 = vmatpush.msra.mxu0 %v1121
    %1292 = vmatpush.msra.mxu0 %v1120
    %1293 = vmatpush.msra.mxu0 %v1119
    %1294 = vmatpush.msra.mxu0 %v1118
    %1295 = vmatpush.msra.mxu0 %v1117
    %1296 = vmatpush.msra.mxu0 %v1116
    %1297 = vmatpush.msra.mxu0 %v1115
    %1298 = vmatpush.msra.mxu0 %v1114
    %1299 = vmatpush.msra.mxu0 %v1113
    %1300 = vmatpush.msra.mxu0 %v1112
    %1301 = vmatpush.msra.mxu0 %v1111
    %1302 = vmatpush.msra.mxu0 %v1110
    %1303 = vmatpush.msra.mxu0 %v1109
    %1304 = vmatmul.f32.gmra.mxu0 %v1011
    %v1305 = vpop.f32.mrf.mxu0
    %v1306 = vadd.f32 %v1286, %v1305
    %1307 = vdwg.mxu0
    %1308 = vmatpush.msra.mxu0 %v1140
    %1309 = vmatpush.msra.mxu0 %v1139
    %1310 = vmatpush.msra.mxu0 %v1138
    %1311 = vmatpush.msra.mxu0 %v1137
    %1312 = vmatpush.msra.mxu0 %v1136
    %1313 = vmatpush.msra.mxu0 %v1135
    %1314 = vmatpush.msra.mxu0 %v1134
    %1315 = vmatpush.msra.mxu0 %v1133
    %1316 = vmatpush.msra.mxu0 %v1132
    %1317 = vmatpush.msra.mxu0 %v1131
    %1318 = vmatpush.msra.mxu0 %v1130
    %1319 = vmatpush.msra.mxu0 %v1129
    %1320 = vmatpush.msra.mxu0 %v1128
    %1321 = vmatpush.msra.mxu0 %v1127
    %1322 = vmatpush.msra.mxu0 %v1126
    %1323 = vmatpush.msra.mxu0 %v1125
    %1324 = vmatmul.f32.gmra.mxu0 %v1012
    %v1325 = vpop.f32.mrf.mxu0
    %v1326 = vadd.f32 %v1306, %v1325
    %1327 = vdwg.mxu0
    %v1328 = vld [vmem:[%s9] sm:$0xff]
    %v1329 = vld [vmem:[%s9 + $0x8] sm:$0xff]
    %v1330 = vld [vmem:[%s9 + $0x10] sm:$0xff]
    %v1331 = vld [vmem:[%s9 + $0x18] sm:$0xff]
    %v1332 = vld [vmem:[%s9 + $0x20] sm:$0xff]
    %v1333 = vld [vmem:[%s9 + $0x28] sm:$0xff]
    %v1334 = vld [vmem:[%s9 + $0x30] sm:$0xff]
    %v1335 = vld [vmem:[%s9 + $0x38] sm:$0xff]
    %v1336 = vld [vmem:[%s9 + $0x40] sm:$0xff]
    %v1337 = vsel %vm483, %v530, 0
    %1339 = vmatpush.msra.mxu0 0.0
    %1340 = vmatpush.msra.mxu0 0.0
    %1341 = vmatpush.msra.mxu0 0.0
    %1342 = vmatpush.msra.mxu0 0.0
    %1343 = vmatpush.msra.mxu0 0.0
    %1344 = vmatpush.msra.mxu0 0.0
    %1345 = vmatpush.msra.mxu0 0.0
    %1346 = vmatpush.msra.mxu0 %v1336
    %1347 = vmatpush.msra.mxu0 %v1335
    %1348 = vmatpush.msra.mxu0 %v1334
    %1349 = vmatpush.msra.mxu0 %v1333
    %1350 = vmatpush.msra.mxu0 %v1332
    %1351 = vmatpush.msra.mxu0 %v1331
    %1352 = vmatpush.msra.mxu0 %v1330
    %1353 = vmatpush.msra.mxu0 %v1329
    %1354 = vmatpush.msra.mxu0 %v1328
    %1355 = vmatmul.f32.gmra.mxu0 %v1337
    %v1356 = vpop.f32.mrf.mxu0
    %v1357 = vadd.f32 0.0, %v1356
    %1358 = vdwg.mxu0
    %v1359 = vadd.f32 %v1326, %v1357
    %v1360 = vmax.f32 %v1359, 0.0
    %vm1361 = vcmask 64512
    %1362 = vst.msk [vmem:[#allocation2] sm:$0xff] %vm1361, %v1360
    // Predicated region
    $region42: #{hyperdqn_forward.1} parent=1 // pred_check
      _
    $region43: #{hyperdqn_forward.1} parent=1 // pred_check_branch
      %1364 = sbr.rel (0) target = $region45
    $region44: #{hyperdqn_forward.1} parent=1 // pred_region
      %1366 = vsyncadd [#allocation3], 0
      %s1368 = sshll.u32 [#allocation2], 4
      %s1369 = int_to_ptr.vmem [resolvable:$true] %s1368
      %s1370 = sshll.u32 %s10, 4
      %s1371 = int_to_ptr.hbm [resolvable:$true] %s1370
      %1373 = dma.vmem_to_hbm [thread:$0]  %s1369, 128, %s1371, [#allocation3]
    $region45: #{hyperdqn_forward.1} parent=1 // pred_fallthru
      _
    // Predicated region
    $region46: #{hyperdqn_forward.1} parent=1 // pred_check
      _
    $region47: #{hyperdqn_forward.1} parent=1 // pred_check_branch
      %1375 = sbr.rel (0) target = $region49
    $region48: #{hyperdqn_forward.1} parent=1 // pred_region
      %1377 = dma.done [#allocation3], 128
    $region49: #{hyperdqn_forward.1} parent=1 // pred_fallthru
      _
    %1378 = vsyncpa [#allocation3], 1

</llo_original>
